<compile_context>
chip_gen: v7x
topology: tpu7x:2x2x1
jax: 0.10.0
libtpu: 0.0.40
codegen_flags: <defaults>
</compile_context>

<pallas_src>
import jax
import jax.numpy as jnp
from jax.experimental import pallas as pl
from jax.experimental.pallas import tpu as pltpu

HIDDEN1 = 16
HIDDEN2 = 32


def qnet_kernel(x_ref, w1_ref, b1_ref, w2_ref, b2_ref, w3_ref, b3_ref, out_ref):
    """Fused 3-layer MLP forward for one (TB, obs) batch tile (all in VMEM)."""
    # bf16 inputs feed the MXU natively on v5e/v6e/v7x; accumulate in f32.
    x = x_ref[...].astype(jnp.bfloat16)                      # (TB, obs)

    # Layer 1: Linear(obs -> 16) + ReLU   (bias-add / ReLU kept in f32)
    h1 = jnp.dot(x, w1_ref[...].astype(jnp.bfloat16),
                 preferred_element_type=jnp.float32)
    h1 = jnp.maximum(h1 + b1_ref[...], 0.0)                  # (TB, 16)

    # Layer 2: Linear(16 -> 32) + ReLU
    h2 = jnp.dot(h1.astype(jnp.bfloat16), w2_ref[...].astype(jnp.bfloat16),
                 preferred_element_type=jnp.float32)
    h2 = jnp.maximum(h2 + b2_ref[...], 0.0)                  # (TB, 32)

    # Layer 3: Linear(32 -> act)  (no activation — raw Q-values)
    q = jnp.dot(h2.astype(jnp.bfloat16), w3_ref[...].astype(jnp.bfloat16),
                preferred_element_type=jnp.float32)
    out_ref[...] = (q + b3_ref[...]).astype(out_ref.dtype)   # (TB, act)


def _round_up(n, m):
    return ((n + m - 1) // m) * m


def qnetwork_forward(x, params, *, block_batch=512):
    """Batched forward: grid over batch rows, weights resident across the grid."""
    w1, b1, w2, b2, w3, b3 = params
    batch, obs = x.shape
    act = w3.shape[1]

    # Batch tile: multiple of 8 (sublane), >=512 rows when the batch allows it
    # (amortizes the ~0.35 us/grid-step overhead); VMEM is a non-issue here.
    tb = min(block_batch, _round_up(batch, 8))
    padded = _round_up(batch, tb)
    if padded != batch:
        x = jnp.pad(x, ((0, padded - batch), (0, 0)))
    grid = (padded // tb,)

    const = lambda shape: pl.BlockSpec(shape, lambda i: (0,) * len(shape))

    out_padded = pl.pallas_call(
        qnet_kernel,
        out_shape=jax.ShapeDtypeStruct((padded, act), jnp.float32),
        grid=grid,
        in_specs=[
            pl.BlockSpec((tb, obs), lambda i: (i, 0)),   # x: tiled over batch
            const(w1.shape), const(b1.shape),            # weights/biases: resident
            const(w2.shape), const(b2.shape),
            const(w3.shape), const(b3.shape),
        ],
        out_specs=pl.BlockSpec((tb, act), lambda i: (i, 0)),
        compiler_params=pltpu.CompilerParams(
            dimension_semantics=("parallel",)),          # v7x: shard batch over 2 TCs
    )(x, w1, b1, w2, b2, w3, b3)

    return out_padded[:batch]


def init_params(key, obs_space_dims, action_space_dims):
    """Deterministic init mimicking PyTorch nn.Linear default U[-1/sqrt(fan_in), +]."""
    dims = [(obs_space_dims, HIDDEN1), (HIDDEN1, HIDDEN2),
            (HIDDEN2, action_space_dims)]
    params = []
    for fan_in, fan_out in dims:
        key, kw, kb = jax.random.split(key, 3)
        bound = 1.0 / jnp.sqrt(fan_in)
        w = jax.random.uniform(kw, (fan_in, fan_out), jnp.float32, -bound, bound)
        b = jax.random.uniform(kb, (1, fan_out), jnp.float32, -bound, bound)
        params.extend([w, b])
    return tuple(params)


def qnetwork_reference(x, params):
    """Plain-JAX reference matching the kernel's bf16-matmul / f32-accumulate math."""
    w1, b1, w2, b2, w3, b3 = params
    bf = jnp.bfloat16
    h1 = jnp.maximum(
        jnp.dot(x.astype(bf), w1.astype(bf), preferred_element_type=jnp.float32) + b1, 0.0)
    h2 = jnp.maximum(
        jnp.dot(h1.astype(bf), w2.astype(bf), preferred_element_type=jnp.float32) + b2, 0.0)
    return jnp.dot(h2.astype(bf), w3.astype(bf), preferred_element_type=jnp.float32) + b3


if __name__ == "__main__":
    obs_space_dims = 8      # e.g. small MuJoCo observation dim
    action_space_dims = 4   # number of discrete actions
    batch = 1000            # non-multiple of the 512-row tile -> exercises padding

    key = jax.random.PRNGKey(0)
    key, kx = jax.random.split(key)
    x = jax.random.normal(kx, (batch, obs_space_dims), jnp.float32)
    params = init_params(key, obs_space_dims, action_space_dims)

    q = qnetwork_forward(x, params)
    q = jax.block_until_ready(q)

    q_ref = qnetwork_reference(x, params)
    assert q.shape == (batch, action_space_dims)
    assert jnp.allclose(q, q_ref, atol=1e-3, rtol=1e-3), "mismatch vs reference"

    print("KERNEL_OK")
</pallas_src>

<mosaic_0001>
module attributes {stable_mosaic.version = 11 : i64} {
  func.func @qnet_kernel(%arg0: i32, %arg1: memref<512x8xf32, #tpu.memory_space<vmem>>, %arg2: memref<8x16xf32, #tpu.memory_space<vmem>>, %arg3: memref<1x16xf32, #tpu.memory_space<vmem>>, %arg4: memref<16x32xf32, #tpu.memory_space<vmem>>, %arg5: memref<1x32xf32, #tpu.memory_space<vmem>>, %arg6: memref<32x4xf32, #tpu.memory_space<vmem>>, %arg7: memref<1x4xf32, #tpu.memory_space<vmem>>, %arg8: memref<512x4xf32, #tpu.memory_space<vmem>>) attributes {dimension_semantics = [#tpu.dimension_semantics<parallel>], iteration_bounds = array<i64: 2>, scalar_prefetch = 0 : i64, scratch_operands = 0 : i64, tpu.core_type = #tpu.core_type<tc>, window_params = [{transform_indices = @transform_0, window_bounds = array<i64: 512, 8>}, {pipeline_mode = #tpu.pipeline_mode<synchronous>, transform_indices = @transform_1, window_bounds = array<i64: 8, 16>}, {pipeline_mode = #tpu.pipeline_mode<synchronous>, transform_indices = @transform_2, window_bounds = array<i64: 1, 16>}, {pipeline_mode = #tpu.pipeline_mode<synchronous>, transform_indices = @transform_3, window_bounds = array<i64: 16, 32>}, {pipeline_mode = #tpu.pipeline_mode<synchronous>, transform_indices = @transform_4, window_bounds = array<i64: 1, 32>}, {pipeline_mode = #tpu.pipeline_mode<synchronous>, transform_indices = @transform_5, window_bounds = array<i64: 32, 4>}, {pipeline_mode = #tpu.pipeline_mode<synchronous>, transform_indices = @transform_6, window_bounds = array<i64: 1, 4>}, {transform_indices = @transform_7, window_bounds = array<i64: 512, 4>}]} {
    %c0 = arith.constant 0 : index
    %c0_0 = arith.constant 0 : index
    %0 = vector.load %arg1[%c0, %c0_0] : memref<512x8xf32, #tpu.memory_space<vmem>>, vector<512x8xf32>
    %1 = arith.truncf %0 : vector<512x8xf32> to vector<512x8xbf16>
    %c0_1 = arith.constant 0 : index
    %c0_2 = arith.constant 0 : index
    %2 = vector.load %arg2[%c0_1, %c0_2] : memref<8x16xf32, #tpu.memory_space<vmem>>, vector<8x16xf32>
    %3 = arith.truncf %2 : vector<8x16xf32> to vector<8x16xbf16>
    %cst = arith.constant dense<0.000000e+00> : vector<512x16xf32>
    %4 = tpu.matmul %1, %3, %cst {dimension_numbers = #tpu.dot_dimension_numbers<[1], [0], [0], [1], [0, 0, 1, 1], [], []>} : vector<512x8xbf16>, vector<8x16xbf16>, vector<512x16xf32> -> vector<512x16xf32>
    %c0_3 = arith.constant 0 : index
    %c0_4 = arith.constant 0 : index
    %5 = vector.load %arg3[%c0_3, %c0_4] : memref<1x16xf32, #tpu.memory_space<vmem>>, vector<1x16xf32>
    %6 = vector.broadcast %5 : vector<1x16xf32> to vector<512x16xf32>
    %7 = arith.addf %4, %6 : vector<512x16xf32>
    %cst_5 = arith.constant 0.000000e+00 : f32
    %8 = vector.broadcast %cst_5 : f32 to vector<512x16xf32>
    %9 = arith.maximumf %7, %8 : vector<512x16xf32>
    %10 = arith.truncf %9 : vector<512x16xf32> to vector<512x16xbf16>
    %c0_6 = arith.constant 0 : index
    %c0_7 = arith.constant 0 : index
    %11 = vector.load %arg4[%c0_6, %c0_7] : memref<16x32xf32, #tpu.memory_space<vmem>>, vector<16x32xf32>
    %12 = arith.truncf %11 : vector<16x32xf32> to vector<16x32xbf16>
    %cst_8 = arith.constant dense<0.000000e+00> : vector<512x32xf32>
    %13 = tpu.matmul %10, %12, %cst_8 {dimension_numbers = #tpu.dot_dimension_numbers<[1], [0], [0], [1], [0, 0, 1, 1], [], []>} : vector<512x16xbf16>, vector<16x32xbf16>, vector<512x32xf32> -> vector<512x32xf32>
    %c0_9 = arith.constant 0 : index
    %c0_10 = arith.constant 0 : index
    %14 = vector.load %arg5[%c0_9, %c0_10] : memref<1x32xf32, #tpu.memory_space<vmem>>, vector<1x32xf32>
    %15 = vector.broadcast %14 : vector<1x32xf32> to vector<512x32xf32>
    %16 = arith.addf %13, %15 : vector<512x32xf32>
    %cst_11 = arith.constant 0.000000e+00 : f32
    %17 = vector.broadcast %cst_11 : f32 to vector<512x32xf32>
    %18 = arith.maximumf %16, %17 : vector<512x32xf32>
    %19 = arith.truncf %18 : vector<512x32xf32> to vector<512x32xbf16>
    %c0_12 = arith.constant 0 : index
    %c0_13 = arith.constant 0 : index
    %20 = vector.load %arg6[%c0_12, %c0_13] : memref<32x4xf32, #tpu.memory_space<vmem>>, vector<32x4xf32>
    %21 = arith.truncf %20 : vector<32x4xf32> to vector<32x4xbf16>
    %cst_14 = arith.constant dense<0.000000e+00> : vector<512x4xf32>
    %22 = tpu.matmul %19, %21, %cst_14 {dimension_numbers = #tpu.dot_dimension_numbers<[1], [0], [0], [1], [0, 0, 1, 1], [], []>} : vector<512x32xbf16>, vector<32x4xbf16>, vector<512x4xf32> -> vector<512x4xf32>
    %c0_15 = arith.constant 0 : index
    %c0_16 = arith.constant 0 : index
    %23 = vector.load %arg7[%c0_15, %c0_16] : memref<1x4xf32, #tpu.memory_space<vmem>>, vector<1x4xf32>
    %24 = vector.broadcast %23 : vector<1x4xf32> to vector<512x4xf32>
    %25 = arith.addf %22, %24 : vector<512x4xf32>
    %c0_17 = arith.constant 0 : index
    %c0_18 = arith.constant 0 : index
    %26 = vector.load %arg8[%c0_17, %c0_18] : memref<512x4xf32, #tpu.memory_space<vmem>>, vector<512x4xf32>
    tpu.vector_store %arg8[%c0_17, %c0_18], %25 {strides = array<i32>} : memref<512x4xf32, #tpu.memory_space<vmem>>, vector<512x4xf32>,
    return
  }
  func.func @transform_0(%arg0: i32) -> (i32, i32) {
    %c0_i32 = arith.constant 0 : i32
    %c0_i32_0 = arith.constant 0 : i32
    return %arg0, %c0_i32 : i32, i32
  }
  func.func @transform_1(%arg0: i32) -> (i32, i32) {
    %c0_i32 = arith.constant 0 : i32
    %c0_i32_0 = arith.constant 0 : i32
    %c0_i32_1 = arith.constant 0 : i32
    return %c0_i32, %c0_i32_0 : i32, i32
  }
  func.func @transform_2(%arg0: i32) -> (i32, i32) {
    %c0_i32 = arith.constant 0 : i32
    %c0_i32_0 = arith.constant 0 : i32
    %c0_i32_1 = arith.constant 0 : i32
    return %c0_i32, %c0_i32_0 : i32, i32
  }
  func.func @transform_3(%arg0: i32) -> (i32, i32) {
    %c0_i32 = arith.constant 0 : i32
    %c0_i32_0 = arith.constant 0 : i32
    %c0_i32_1 = arith.constant 0 : i32
    return %c0_i32, %c0_i32_0 : i32, i32
  }
  func.func @transform_4(%arg0: i32) -> (i32, i32) {
    %c0_i32 = arith.constant 0 : i32
    %c0_i32_0 = arith.constant 0 : i32
    %c0_i32_1 = arith.constant 0 : i32
    return %c0_i32, %c0_i32_0 : i32, i32
  }
  func.func @transform_5(%arg0: i32) -> (i32, i32) {
    %c0_i32 = arith.constant 0 : i32
    %c0_i32_0 = arith.constant 0 : i32
    %c0_i32_1 = arith.constant 0 : i32
    return %c0_i32, %c0_i32_0 : i32, i32
  }
  func.func @transform_6(%arg0: i32) -> (i32, i32) {
    %c0_i32 = arith.constant 0 : i32
    %c0_i32_0 = arith.constant 0 : i32
    %c0_i32_1 = arith.constant 0 : i32
    return %c0_i32, %c0_i32_0 : i32, i32
  }
  func.func @transform_7(%arg0: i32) -> (i32, i32) {
    %c0_i32 = arith.constant 0 : i32
    %c0_i32_0 = arith.constant 0 : i32
    return %arg0, %c0_i32 : i32, i32
  }
}

</mosaic_0001>

<llo_original>
// kernel: tpu_custom_call.1
$region0: #{tpu_custom_call.1}
  #allocation0 [shape = 'u32[]', space=smem, size = 0x4, offset = 0x4, fixed_abs, tag = 'smem constant byte address 0x4 - core index']
  #allocation1 [shape = 'u32[144,128]{1,0:T(1,128)}', space=vmem, size = 0x12000, scoped, tag = 'internal scratch']
  %s0 = inlined_call_operand.vmem [shape: f32[1024,8], index: 0, kind: input, shape index: {}]
  %s1 = inlined_call_operand.vmem [shape: f32[8,16], index: 1, kind: input, shape index: {}]
  %s2 = inlined_call_operand.vmem [shape: f32[1,16], index: 2, kind: input, shape index: {}]
  %s3 = inlined_call_operand.vmem [shape: f32[16,32], index: 3, kind: input, shape index: {}]
  %s4 = inlined_call_operand.vmem [shape: f32[1,32], index: 4, kind: input, shape index: {}]
  %s5 = inlined_call_operand.vmem [shape: f32[32,4], index: 5, kind: input, shape index: {}]
  %s6 = inlined_call_operand.vmem [shape: f32[1,4], index: 6, kind: input, shape index: {}]
  %s7 = inlined_call_operand.vmem [shape: f32[1024,4], index: 7, kind: output, shape index: {}]
  %s8 = sld [smem:[#allocation0]]
  $region61: #{tpu_custom_call.1} parent=0
    _
  %s10 = ssub.s32 1, %s8
  %s11 = scalar_select 0, %s10, %s8
  loop: start=0, step=1, limit=4
  $region2: #{tpu_custom_call.1} parent=0 // loop_pre_header
    _
  $region3: #{tpu_custom_call.1} parent=0 // loop_header
    %s13 = sphi 0, %s17
    %p14 = scmp.ge.s32.totalorder %s13, 4
    %s23 = sphi 0, %s25
    %s26 = sphi 0, %s23
    %s27 = sphi 0, %s26
    %s43 = sphi 0, %s27
    %s47 = sphi 0, %s47
    %s49 = sphi 0, %s47
    %s50 = sphi 0, %s49
    %s64 = sphi 0, %s50
    %s68 = sphi 0, %s68
    %s70 = sphi 0, %s68
    %s71 = sphi 0, %s70
    %s85 = sphi 0, %s71
    %s89 = sphi 0, %s89
    %s91 = sphi 0, %s89
    %s92 = sphi 0, %s91
    %s106 = sphi 0, %s92
    %s110 = sphi 0, %s110
    %s112 = sphi 0, %s110
    %s113 = sphi 0, %s112
    %s127 = sphi 0, %s113
    %s131 = sphi 0, %s131
    %s133 = sphi 0, %s131
    %s134 = sphi 0, %s133
    %s148 = sphi 0, %s134
    %s152 = sphi 0, %s152
    %s154 = sphi 0, %s152
    %s155 = sphi 0, %s154
    %s169 = sphi 0, %s155
    %s175 = sphi 0, %s177
    %s178 = sphi 0, %s175
    %s179 = sphi 0, %s178
    %s195 = sphi 0, %s179
  $region4: #{tpu_custom_call.1} parent=0 // loop_header_branch
    %16 = sbr.rel (%p14) target = $region8
  $region5: #{tpu_custom_call.1} parent=0 // loop_body
    %s18 = ssub.s32 %s13, 1
    %s19 = ssub.s32 %s13, 2
    %s20 = sadd.s32 %s13, 1
    %s21 = ssub.s32 %s13, %s20
    %p22 = scmp.eq.s32.totalorder %s21, 0
    %s24 = sadd.s32 %s23, 1
    %s25 = scalar_select %p22, %s23, %s24
    %p28 = pneg %p22
    %p29 = scmp.eq.s32.totalorder %s13, 1
    %p30 = por %p28, %p29
    %p31 = scmp.ne.s32.totalorder %s23, %s26
    %p32 = scmp.eq.s32.totalorder %s13, 0
    %p33 = por %p31, %p32
    %p34 = scmp.ne.s32.totalorder %s23, %s26
    %p35 = scmp.eq.s32.totalorder %s18, 1
    %p36 = por %p34, %p35
    %p37 = scmp.ne.s32.totalorder %s26, %s27
    %p38 = scmp.eq.s32.totalorder %s18, 0
    %p39 = por %p37, %p38
    %p40 = scmp.ne.s32.totalorder %s26, %s27
    %p41 = scmp.eq.s32.totalorder %s19, 1
    %p42 = por %p40, %p41
    %p44 = scmp.ne.s32.totalorder %s27, %s43
    %p45 = scmp.eq.s32.totalorder %s19, 0
    %p46 = por %p44, %p45
    %s48 = sadd.s32 %s47, 1
    %p51 = scmp.eq.s32.totalorder %s13, 1
    %p52 = scmp.ne.s32.totalorder %s47, %s49
    %p53 = scmp.eq.s32.totalorder %s13, 0
    %p54 = por %p52, %p53
    %p55 = scmp.ne.s32.totalorder %s47, %s49
    %p56 = scmp.eq.s32.totalorder %s18, 1
    %p57 = por %p55, %p56
    %p58 = scmp.ne.s32.totalorder %s49, %s50
    %p59 = scmp.eq.s32.totalorder %s18, 0
    %p60 = por %p58, %p59
    %p61 = scmp.ne.s32.totalorder %s49, %s50
    %p62 = scmp.eq.s32.totalorder %s19, 1
    %p63 = por %p61, %p62
    %p65 = scmp.ne.s32.totalorder %s50, %s64
    %p66 = scmp.eq.s32.totalorder %s19, 0
    %p67 = por %p65, %p66
    %s69 = sadd.s32 %s68, 1
    %p72 = scmp.eq.s32.totalorder %s13, 1
    %p73 = scmp.ne.s32.totalorder %s68, %s70
    %p74 = scmp.eq.s32.totalorder %s13, 0
    %p75 = por %p73, %p74
    %p76 = scmp.ne.s32.totalorder %s68, %s70
    %p77 = scmp.eq.s32.totalorder %s18, 1
    %p78 = por %p76, %p77
    %p79 = scmp.ne.s32.totalorder %s70, %s71
    %p80 = scmp.eq.s32.totalorder %s18, 0
    %p81 = por %p79, %p80
    %p82 = scmp.ne.s32.totalorder %s70, %s71
    %p83 = scmp.eq.s32.totalorder %s19, 1
    %p84 = por %p82, %p83
    %p86 = scmp.ne.s32.totalorder %s71, %s85
    %p87 = scmp.eq.s32.totalorder %s19, 0
    %p88 = por %p86, %p87
    %s90 = sadd.s32 %s89, 1
    %p93 = scmp.eq.s32.totalorder %s13, 1
    %p94 = scmp.ne.s32.totalorder %s89, %s91
    %p95 = scmp.eq.s32.totalorder %s13, 0
    %p96 = por %p94, %p95
    %p97 = scmp.ne.s32.totalorder %s89, %s91
    %p98 = scmp.eq.s32.totalorder %s18, 1
    %p99 = por %p97, %p98
    %p100 = scmp.ne.s32.totalorder %s91, %s92
    %p101 = scmp.eq.s32.totalorder %s18, 0
    %p102 = por %p100, %p101
    %p103 = scmp.ne.s32.totalorder %s91, %s92
    %p104 = scmp.eq.s32.totalorder %s19, 1
    %p105 = por %p103, %p104
    %p107 = scmp.ne.s32.totalorder %s92, %s106
    %p108 = scmp.eq.s32.totalorder %s19, 0
    %p109 = por %p107, %p108
    %s111 = sadd.s32 %s110, 1
    %p114 = scmp.eq.s32.totalorder %s13, 1
    %p115 = scmp.ne.s32.totalorder %s110, %s112
    %p116 = scmp.eq.s32.totalorder %s13, 0
    %p117 = por %p115, %p116
    %p118 = scmp.ne.s32.totalorder %s110, %s112
    %p119 = scmp.eq.s32.totalorder %s18, 1
    %p120 = por %p118, %p119
    %p121 = scmp.ne.s32.totalorder %s112, %s113
    %p122 = scmp.eq.s32.totalorder %s18, 0
    %p123 = por %p121, %p122
    %p124 = scmp.ne.s32.totalorder %s112, %s113
    %p125 = scmp.eq.s32.totalorder %s19, 1
    %p126 = por %p124, %p125
    %p128 = scmp.ne.s32.totalorder %s113, %s127
    %p129 = scmp.eq.s32.totalorder %s19, 0
    %p130 = por %p128, %p129
    %s132 = sadd.s32 %s131, 1
    %p135 = scmp.eq.s32.totalorder %s13, 1
    %p136 = scmp.ne.s32.totalorder %s131, %s133
    %p137 = scmp.eq.s32.totalorder %s13, 0
    %p138 = por %p136, %p137
    %p139 = scmp.ne.s32.totalorder %s131, %s133
    %p140 = scmp.eq.s32.totalorder %s18, 1
    %p141 = por %p139, %p140
    %p142 = scmp.ne.s32.totalorder %s133, %s134
    %p143 = scmp.eq.s32.totalorder %s18, 0
    %p144 = por %p142, %p143
    %p145 = scmp.ne.s32.totalorder %s133, %s134
    %p146 = scmp.eq.s32.totalorder %s19, 1
    %p147 = por %p145, %p146
    %p149 = scmp.ne.s32.totalorder %s134, %s148
    %p150 = scmp.eq.s32.totalorder %s19, 0
    %p151 = por %p149, %p150
    %s153 = sadd.s32 %s152, 1
    %p156 = scmp.eq.s32.totalorder %s13, 1
    %p157 = scmp.ne.s32.totalorder %s152, %s154
    %p158 = scmp.eq.s32.totalorder %s13, 0
    %p159 = por %p157, %p158
    %p160 = scmp.ne.s32.totalorder %s152, %s154
    %p161 = scmp.eq.s32.totalorder %s18, 1
    %p162 = por %p160, %p161
    %p163 = scmp.ne.s32.totalorder %s154, %s155
    %p164 = scmp.eq.s32.totalorder %s18, 0
    %p165 = por %p163, %p164
    %p166 = scmp.ne.s32.totalorder %s154, %s155
    %p167 = scmp.eq.s32.totalorder %s19, 1
    %p168 = por %p166, %p167
    %p170 = scmp.ne.s32.totalorder %s155, %s169
    %p171 = scmp.eq.s32.totalorder %s19, 0
    %p172 = por %p170, %p171
    %s173 = ssub.s32 %s13, %s20
    %p174 = scmp.eq.s32.totalorder %s173, 0
    %s176 = sadd.s32 %s175, 1
    %s177 = scalar_select %p174, %s175, %s176
    %p180 = pneg %p174
    %p181 = scmp.eq.s32.totalorder %s13, 1
    %p182 = por %p180, %p181
    %p183 = scmp.ne.s32.totalorder %s175, %s178
    %p184 = scmp.eq.s32.totalorder %s13, 0
    %p185 = por %p183, %p184
    %p186 = scmp.ne.s32.totalorder %s175, %s178
    %p187 = scmp.eq.s32.totalorder %s18, 1
    %p188 = por %p186, %p187
    %p189 = scmp.ne.s32.totalorder %s178, %s179
    %p190 = scmp.eq.s32.totalorder %s18, 0
    %p191 = por %p189, %p190
    %p192 = scmp.ne.s32.totalorder %s178, %s179
    %p193 = scmp.eq.s32.totalorder %s19, 1
    %p194 = por %p192, %p193
    %p196 = scmp.ne.s32.totalorder %s179, %s195
    %p197 = scmp.eq.s32.totalorder %s19, 0
    %p198 = por %p196, %p197
    %p199 = scmp.le.s32.totalorder 1, %s13
    %p200 = scmp.lt.s32.totalorder %s13, 3
    %p201 = pnand %p199, %p200
    %p202 = pneg %p201
    // Predicated region
    $region9: #{tpu_custom_call.1} parent=5 // pred_check
      _
    $region10: #{tpu_custom_call.1} parent=5 // pred_check_branch
      %204 = sbr.rel (%p201) target = $region12
    $region11: #{tpu_custom_call.1} parent=5 // pred_region
      %s205 = ssub.s32 %s13, 1
      // Predicated region
      $region13: #{tpu_custom_call.1} parent=11 // pred_check
        %p206 = pneg %p60
      $region14: #{tpu_custom_call.1} parent=11 // pred_check_branch
        %208 = sbr.rel (%p206) target = $region16
      $region15: #{tpu_custom_call.1} parent=11 // pred_region
        _
      $region16: #{tpu_custom_call.1} parent=11 // pred_fallthru
        _
      // Predicated region
      $region17: #{tpu_custom_call.1} parent=11 // pred_check
        %p209 = pneg %p81
      $region18: #{tpu_custom_call.1} parent=11 // pred_check_branch
        %211 = sbr.rel (%p209) target = $region20
      $region19: #{tpu_custom_call.1} parent=11 // pred_region
        _
      $region20: #{tpu_custom_call.1} parent=11 // pred_fallthru
        _
      // Predicated region
      $region21: #{tpu_custom_call.1} parent=11 // pred_check
        %p212 = pneg %p102
      $region22: #{tpu_custom_call.1} parent=11 // pred_check_branch
        %214 = sbr.rel (%p212) target = $region24
      $region23: #{tpu_custom_call.1} parent=11 // pred_region
        _
      $region24: #{tpu_custom_call.1} parent=11 // pred_fallthru
        _
      // Predicated region
      $region25: #{tpu_custom_call.1} parent=11 // pred_check
        %p215 = pneg %p123
      $region26: #{tpu_custom_call.1} parent=11 // pred_check_branch
        %217 = sbr.rel (%p215) target = $region28
      $region27: #{tpu_custom_call.1} parent=11 // pred_region
        _
      $region28: #{tpu_custom_call.1} parent=11 // pred_fallthru
        _
      // Predicated region
      $region29: #{tpu_custom_call.1} parent=11 // pred_check
        %p218 = pneg %p144
      $region30: #{tpu_custom_call.1} parent=11 // pred_check_branch
        %220 = sbr.rel (%p218) target = $region32
      $region31: #{tpu_custom_call.1} parent=11 // pred_region
        _
      $region32: #{tpu_custom_call.1} parent=11 // pred_fallthru
        _
      // Predicated region
      $region33: #{tpu_custom_call.1} parent=11 // pred_check
        %p221 = pneg %p165
      $region34: #{tpu_custom_call.1} parent=11 // pred_check_branch
        %223 = sbr.rel (%p221) target = $region36
      $region35: #{tpu_custom_call.1} parent=11 // pred_region
        _
      $region36: #{tpu_custom_call.1} parent=11 // pred_fallthru
        _
    $region12: #{tpu_custom_call.1} parent=5 // pred_fallthru
      _
    %p224 = scmp.lt.s32.totalorder %s13, 2
    // Predicated region
    $region37: #{tpu_custom_call.1} parent=5 // pred_check
      %p225 = pneg %p224
    $region38: #{tpu_custom_call.1} parent=5 // pred_check_branch
      %227 = sbr.rel (%p225) target = $region40
    $region39: #{tpu_custom_call.1} parent=5 // pred_region
      // Predicated region
      $region41: #{tpu_custom_call.1} parent=39 // pred_check
        %p228 = pneg %p33
      $region42: #{tpu_custom_call.1} parent=39 // pred_check_branch
        %230 = sbr.rel (%p228) target = $region44
      $region43: #{tpu_custom_call.1} parent=39 // pred_region
        %s231 = smul.u32 64, %s13
        %p232 = scmp.lt.s32.totalorder %s231, 127
        %s233 = scalar_select %p232, %s231, 127
        %s234 = smul.addr %s233, 8
        %s235 = scalar_lea.vmem %s0, %s234
        %s236 = smul.u32 64, %s13
      $region44: #{tpu_custom_call.1} parent=39 // pred_fallthru
        _
    $region40: #{tpu_custom_call.1} parent=5 // pred_fallthru
      _
    %p237 = scmp.le.s32.totalorder 1, %s13
    %p238 = scmp.lt.s32.totalorder %s13, 3
    %p239 = pnand %p237, %p238
    %p240 = pneg %p239
    // Predicated region
    $region45: #{tpu_custom_call.1} parent=5 // pred_check
      _
    $region46: #{tpu_custom_call.1} parent=5 // pred_check_branch
      %242 = sbr.rel (%p239) target = $region48
    $region47: #{tpu_custom_call.1} parent=5 // pred_region
      %s243 = ssub.s32 %s13, 1
      %s244 = smul.u32 64, %s18
      %p245 = scmp.lt.s32.totalorder %s244, 127
      %s246 = scalar_select %p245, %s244, 127
      %s247 = smul.addr %s246, 8
      %s248 = scalar_lea.vmem %s0, %s247
      %p249 = pneg %p39
      %p250 = pneg %p36
      %p251 = pneg %p60
      %p252 = pneg %p57
      %p253 = pneg %p81
      %p254 = pneg %p78
      %p255 = pneg %p102
      %p256 = pneg %p99
      %p257 = pneg %p123
      %p258 = pneg %p120
      %p259 = pneg %p144
      %p260 = pneg %p141
      %p261 = pneg %p165
      %p262 = pneg %p162
      %p263 = pneg %p191
      %p264 = pneg %p188
      %s265 = smul.u32 64, %s18
      %p266 = scmp.lt.s32.totalorder %s265, 127
      %s267 = scalar_select %p266, %s265, 127
      %s268 = smul.addr %s267, 8
      %s269 = scalar_lea.vmem %s7, %s268
      %s270 = smul.u32 64, %s18
      %p271 = scmp.lt.s32.totalorder %s270, 127
      %s272 = scalar_select %p271, %s270, 127
      %s273 = smul.addr %s272, 8
      %s274 = scalar_lea.vmem %s0, %s273
      %s275 = smul.u32 64, %s18
      %s276 = smul.u32 64, %s18
      %p277 = scmp.lt.s32.totalorder %s276, 127
      %s278 = scalar_select %p277, %s276, 127
      %s279 = smul.addr %s278, 8
      %s280 = scalar_lea.vmem %s7, %s279
      %s281 = smul.u32 64, %s18
      %v283 = vld [vmem:[%s274] sm:$0xff]
      %v284 = vld [vmem:[%s274 + $0x8] sm:$0xff]
      %v285 = vld [vmem:[%s274 + $0x10] sm:$0xff]
      %v286 = vld [vmem:[%s274 + $0x18] sm:$0xff]
      %v287 = vld [vmem:[%s274 + $0x20] sm:$0xff]
      %v288 = vld [vmem:[%s274 + $0x28] sm:$0xff]
      %v289 = vld [vmem:[%s274 + $0x30] sm:$0xff]
      %v290 = vld [vmem:[%s274 + $0x38] sm:$0xff]
      %v291 = vld [vmem:[%s274 + $0x40] sm:$0xff]
      %v292 = vld [vmem:[%s274 + $0x48] sm:$0xff]
      %v293 = vld [vmem:[%s274 + $0x50] sm:$0xff]
      %v294 = vld [vmem:[%s274 + $0x58] sm:$0xff]
      %v295 = vld [vmem:[%s274 + $0x60] sm:$0xff]
      %v296 = vld [vmem:[%s274 + $0x68] sm:$0xff]
      %v297 = vld [vmem:[%s274 + $0x70] sm:$0xff]
      %v298 = vld [vmem:[%s274 + $0x78] sm:$0xff]
      %v299 = vld [vmem:[%s274 + $0x80] sm:$0xff]
      %v300 = vld [vmem:[%s274 + $0x88] sm:$0xff]
      %v301 = vld [vmem:[%s274 + $0x90] sm:$0xff]
      %v302 = vld [vmem:[%s274 + $0x98] sm:$0xff]
      %v303 = vld [vmem:[%s274 + $0xa0] sm:$0xff]
      %v304 = vld [vmem:[%s274 + $0xa8] sm:$0xff]
      %v305 = vld [vmem:[%s274 + $0xb0] sm:$0xff]
      %v306 = vld [vmem:[%s274 + $0xb8] sm:$0xff]
      %v307 = vld [vmem:[%s274 + $0xc0] sm:$0xff]
      %v308 = vld [vmem:[%s274 + $0xc8] sm:$0xff]
      %v309 = vld [vmem:[%s274 + $0xd0] sm:$0xff]
      %v310 = vld [vmem:[%s274 + $0xd8] sm:$0xff]
      %v311 = vld [vmem:[%s274 + $0xe0] sm:$0xff]
      %v312 = vld [vmem:[%s274 + $0xe8] sm:$0xff]
      %v313 = vld [vmem:[%s274 + $0xf0] sm:$0xff]
      %v314 = vld [vmem:[%s274 + $0xf8] sm:$0xff]
      %v315 = vld [vmem:[%s274 + $0x100] sm:$0xff]
      %v316 = vld [vmem:[%s274 + $0x108] sm:$0xff]
      %v317 = vld [vmem:[%s274 + $0x110] sm:$0xff]
      %v318 = vld [vmem:[%s274 + $0x118] sm:$0xff]
      %v319 = vld [vmem:[%s274 + $0x120] sm:$0xff]
      %v320 = vld [vmem:[%s274 + $0x128] sm:$0xff]
      %v321 = vld [vmem:[%s274 + $0x130] sm:$0xff]
      %v322 = vld [vmem:[%s274 + $0x138] sm:$0xff]
      %v323 = vld [vmem:[%s274 + $0x140] sm:$0xff]
      %v324 = vld [vmem:[%s274 + $0x148] sm:$0xff]
      %v325 = vld [vmem:[%s274 + $0x150] sm:$0xff]
      %v326 = vld [vmem:[%s274 + $0x158] sm:$0xff]
      %v327 = vld [vmem:[%s274 + $0x160] sm:$0xff]
      %v328 = vld [vmem:[%s274 + $0x168] sm:$0xff]
      %v329 = vld [vmem:[%s274 + $0x170] sm:$0xff]
      %v330 = vld [vmem:[%s274 + $0x178] sm:$0xff]
      %v331 = vld [vmem:[%s274 + $0x180] sm:$0xff]
      %v332 = vld [vmem:[%s274 + $0x188] sm:$0xff]
      %v333 = vld [vmem:[%s274 + $0x190] sm:$0xff]
      %v334 = vld [vmem:[%s274 + $0x198] sm:$0xff]
      %v335 = vld [vmem:[%s274 + $0x1a0] sm:$0xff]
      %v336 = vld [vmem:[%s274 + $0x1a8] sm:$0xff]
      %v337 = vld [vmem:[%s274 + $0x1b0] sm:$0xff]
      %v338 = vld [vmem:[%s274 + $0x1b8] sm:$0xff]
      %v339 = vld [vmem:[%s274 + $0x1c0] sm:$0xff]
      %v340 = vld [vmem:[%s274 + $0x1c8] sm:$0xff]
      %v341 = vld [vmem:[%s274 + $0x1d0] sm:$0xff]
      %v342 = vld [vmem:[%s274 + $0x1d8] sm:$0xff]
      %v343 = vld [vmem:[%s274 + $0x1e0] sm:$0xff]
      %v344 = vld [vmem:[%s274 + $0x1e8] sm:$0xff]
      %v345 = vld [vmem:[%s274 + $0x1f0] sm:$0xff]
      %v346 = vld [vmem:[%s274 + $0x1f8] sm:$0xff]
      %v347 = vpack.c.bf16 %v284, %v283
      %v348 = vpack.c.bf16 %v286, %v285
      %v349 = vpack.c.bf16 %v288, %v287
      %v350 = vpack.c.bf16 %v290, %v289
      %v351 = vpack.c.bf16 %v292, %v291
      %v352 = vpack.c.bf16 %v294, %v293
      %v353 = vpack.c.bf16 %v296, %v295
      %v354 = vpack.c.bf16 %v298, %v297
      %v355 = vpack.c.bf16 %v300, %v299
      %v356 = vpack.c.bf16 %v302, %v301
      %v357 = vpack.c.bf16 %v304, %v303
      %v358 = vpack.c.bf16 %v306, %v305
      %v359 = vpack.c.bf16 %v308, %v307
      %v360 = vpack.c.bf16 %v310, %v309
      %v361 = vpack.c.bf16 %v312, %v311
      %v362 = vpack.c.bf16 %v314, %v313
      %v363 = vpack.c.bf16 %v316, %v315
      %v364 = vpack.c.bf16 %v318, %v317
      %v365 = vpack.c.bf16 %v320, %v319
      %v366 = vpack.c.bf16 %v322, %v321
      %v367 = vpack.c.bf16 %v324, %v323
      %v368 = vpack.c.bf16 %v326, %v325
      %v369 = vpack.c.bf16 %v328, %v327
      %v370 = vpack.c.bf16 %v330, %v329
      %v371 = vpack.c.bf16 %v332, %v331
      %v372 = vpack.c.bf16 %v334, %v333
      %v373 = vpack.c.bf16 %v336, %v335
      %v374 = vpack.c.bf16 %v338, %v337
      %v375 = vpack.c.bf16 %v340, %v339
      %v376 = vpack.c.bf16 %v342, %v341
      %v377 = vpack.c.bf16 %v344, %v343
      %v378 = vpack.c.bf16 %v346, %v345
      %v379 = vld [vmem:[%s1] sm:$0xff]
      %v380 = vpack.c.bf16 %v379, %v379
      %v381 = vld [vmem:[%s2] sm:$0x1]
      %v383 = vlaneseq
      %v384 = vshrl.u32 %v383, 7
      %v385 = vsub.s32 0, %v384
      %v386 = vrot.slane %v381, %v385
      %vm388 = vcmask 64512
      %v390 = vsel %vm388, %v347, 0
      %v393 = vsel %vm388, %v348, 0
      %v396 = vsel %vm388, %v349, 0
      %v399 = vsel %vm388, %v350, 0
      %v402 = vsel %vm388, %v351, 0
      %v405 = vsel %vm388, %v352, 0
      %v408 = vsel %vm388, %v353, 0
      %v411 = vsel %vm388, %v354, 0
      %v414 = vsel %vm388, %v355, 0
      %v417 = vsel %vm388, %v356, 0
      %v420 = vsel %vm388, %v357, 0
      %v423 = vsel %vm388, %v358, 0
      %v426 = vsel %vm388, %v359, 0
      %v429 = vsel %vm388, %v360, 0
      %v432 = vsel %vm388, %v361, 0
      %v435 = vsel %vm388, %v362, 0
      %v438 = vsel %vm388, %v363, 0
      %v441 = vsel %vm388, %v364, 0
      %v444 = vsel %vm388, %v365, 0
      %v447 = vsel %vm388, %v366, 0
      %v450 = vsel %vm388, %v367, 0
      %v453 = vsel %vm388, %v368, 0
      %v456 = vsel %vm388, %v369, 0
      %v459 = vsel %vm388, %v370, 0
      %v462 = vsel %vm388, %v371, 0
      %v465 = vsel %vm388, %v372, 0
      %v468 = vsel %vm388, %v373, 0
      %v471 = vsel %vm388, %v374, 0
      %v474 = vsel %vm388, %v375, 0
      %v477 = vsel %vm388, %v376, 0
      %v480 = vsel %vm388, %v377, 0
      %v483 = vsel %vm388, %v378, 0
      %vm485 = vcmask 1043456
      %v487 = vsel %vm485, %v380, 0
      %489 = vmatprep.subr.bf16.mxu0 0
      %490 = vmatpush1.bf16.msra.mxu0 %v487
      %491 = vmatprep.subr.bf16.mxu0 0
      %492 = vmatpush1.bf16.msra.mxu0 0
      %493 = vmatprep.subr.bf16.mxu0 0
      %494 = vmatpush1.bf16.msra.mxu0 0
      %495 = vmatprep.subr.bf16.mxu0 0
      %496 = vmatpush1.bf16.msra.mxu0 0
      %497 = vmatprep.subr.bf16.mxu0 0
      %498 = vmatpush1.bf16.msra.mxu0 0
      %499 = vmatprep.subr.bf16.mxu0 0
      %500 = vmatpush1.bf16.msra.mxu0 0
      %501 = vmatprep.subr.bf16.mxu0 0
      %502 = vmatpush1.bf16.msra.mxu0 0
      %503 = vmatprep.subr.bf16.mxu0 0
      %504 = vmatpush1.bf16.msra.mxu0 0
      %505 = vmatprep.subr.bf16.mxu0 0
      %506 = vmatpush1.bf16.msra.mxu0 0
      %507 = vmatprep.subr.bf16.mxu0 0
      %508 = vmatpush1.bf16.msra.mxu0 0
      %509 = vmatprep.subr.bf16.mxu0 0
      %510 = vmatpush1.bf16.msra.mxu0 0
      %511 = vmatprep.subr.bf16.mxu0 0
      %512 = vmatpush1.bf16.msra.mxu0 0
      %513 = vmatprep.subr.bf16.mxu0 0
      %514 = vmatpush1.bf16.msra.mxu0 0
      %515 = vmatprep.subr.bf16.mxu0 0
      %516 = vmatpush1.bf16.msra.mxu0 0
      %517 = vmatprep.subr.bf16.mxu0 0
      %518 = vmatpush1.bf16.msra.mxu0 0
      %519 = vmatprep.subr.bf16.mxu0 0
      %520 = vmatpush1.bf16.msra.mxu0 0
      %521 = vmatprep.mubr.bf16.mxu0 0
      %522 = vmatmul.mubr.bf16.gmra.mrb[0].mxu0 %v390
      %v523 = vpop.f32.mrb[0].mxu0
      %v524 = vadd.f32 %v386, %v523
      %v525 = vpop.f32.mrb[0].mxu0
      %v526 = vpop.f32.mrb[0].mxu0
      %v527 = vadd.f32 %v386, %v526
      %v528 = vpop.f32.mrb[0].mxu0
      %529 = vmatprep.mubr.bf16.mxu0 0
      %530 = vmatmul.mubr.bf16.gmra.mrb[0].mxu0 %v393
      %v531 = vpop.f32.mrb[0].mxu0
      %v532 = vadd.f32 %v386, %v531
      %v533 = vpop.f32.mrb[0].mxu0
      %v534 = vpop.f32.mrb[0].mxu0
      %v535 = vadd.f32 %v386, %v534
      %v536 = vpop.f32.mrb[0].mxu0
      %537 = vmatprep.mubr.bf16.mxu0 0
      %538 = vmatmul.mubr.bf16.gmra.mrb[0].mxu0 %v396
      %v539 = vpop.f32.mrb[0].mxu0
      %v540 = vadd.f32 %v386, %v539
      %v541 = vpop.f32.mrb[0].mxu0
      %v542 = vpop.f32.mrb[0].mxu0
      %v543 = vadd.f32 %v386, %v542
      %v544 = vpop.f32.mrb[0].mxu0
      %545 = vmatprep.mubr.bf16.mxu0 0
      %546 = vmatmul.mubr.bf16.gmra.mrb[0].mxu0 %v399
      %v547 = vpop.f32.mrb[0].mxu0
      %v548 = vadd.f32 %v386, %v547
      %v549 = vpop.f32.mrb[0].mxu0
      %v550 = vpop.f32.mrb[0].mxu0
      %v551 = vadd.f32 %v386, %v550
      %v552 = vpop.f32.mrb[0].mxu0
      %553 = vmatprep.mubr.bf16.mxu0 0
      %554 = vmatmul.mubr.bf16.gmra.mrb[0].mxu0 %v402
      %v555 = vpop.f32.mrb[0].mxu0
      %v556 = vadd.f32 %v386, %v555
      %v557 = vpop.f32.mrb[0].mxu0
      %v558 = vpop.f32.mrb[0].mxu0
      %v559 = vadd.f32 %v386, %v558
      %v560 = vpop.f32.mrb[0].mxu0
      %561 = vmatprep.mubr.bf16.mxu0 0
      %562 = vmatmul.mubr.bf16.gmra.mrb[0].mxu0 %v405
      %v563 = vpop.f32.mrb[0].mxu0
      %v564 = vadd.f32 %v386, %v563
      %v565 = vpop.f32.mrb[0].mxu0
      %v566 = vpop.f32.mrb[0].mxu0
      %v567 = vadd.f32 %v386, %v566
      %v568 = vpop.f32.mrb[0].mxu0
      %569 = vmatprep.mubr.bf16.mxu0 0
      %570 = vmatmul.mubr.bf16.gmra.mrb[0].mxu0 %v408
      %v571 = vpop.f32.mrb[0].mxu0
      %v572 = vadd.f32 %v386, %v571
      %v573 = vpop.f32.mrb[0].mxu0
      %v574 = vpop.f32.mrb[0].mxu0
      %v575 = vadd.f32 %v386, %v574
      %v576 = vpop.f32.mrb[0].mxu0
      %577 = vmatprep.mubr.bf16.mxu0 0
      %578 = vmatmul.mubr.bf16.gmra.mrb[0].mxu0 %v411
      %v579 = vpop.f32.mrb[0].mxu0
      %v580 = vadd.f32 %v386, %v579
      %v581 = vpop.f32.mrb[0].mxu0
      %v582 = vpop.f32.mrb[0].mxu0
      %v583 = vadd.f32 %v386, %v582
      %v584 = vpop.f32.mrb[0].mxu0
      %585 = vmatprep.mubr.bf16.mxu0 0
      %586 = vmatmul.mubr.bf16.gmra.mrb[0].mxu0 %v414
      %v587 = vpop.f32.mrb[0].mxu0
      %v588 = vadd.f32 %v386, %v587
      %v589 = vpop.f32.mrb[0].mxu0
      %v590 = vpop.f32.mrb[0].mxu0
      %v591 = vadd.f32 %v386, %v590
      %v592 = vpop.f32.mrb[0].mxu0
      %593 = vmatprep.mubr.bf16.mxu0 0
      %594 = vmatmul.mubr.bf16.gmra.mrb[0].mxu0 %v417
      %v595 = vpop.f32.mrb[0].mxu0
      %v596 = vadd.f32 %v386, %v595
      %v597 = vpop.f32.mrb[0].mxu0
      %v598 = vpop.f32.mrb[0].mxu0
      %v599 = vadd.f32 %v386, %v598
      %v600 = vpop.f32.mrb[0].mxu0
      %601 = vmatprep.mubr.bf16.mxu0 0
      %602 = vmatmul.mubr.bf16.gmra.mrb[0].mxu0 %v420
      %v603 = vpop.f32.mrb[0].mxu0
      %v604 = vadd.f32 %v386, %v603
      %v605 = vpop.f32.mrb[0].mxu0
      %v606 = vpop.f32.mrb[0].mxu0
      %v607 = vadd.f32 %v386, %v606
      %v608 = vpop.f32.mrb[0].mxu0
      %609 = vmatprep.mubr.bf16.mxu0 0
      %610 = vmatmul.mubr.bf16.gmra.mrb[0].mxu0 %v423
      %v611 = vpop.f32.mrb[0].mxu0
      %v612 = vadd.f32 %v386, %v611
      %v613 = vpop.f32.mrb[0].mxu0
      %v614 = vpop.f32.mrb[0].mxu0
      %v615 = vadd.f32 %v386, %v614
      %v616 = vpop.f32.mrb[0].mxu0
      %617 = vmatprep.mubr.bf16.mxu0 0
      %618 = vmatmul.mubr.bf16.gmra.mrb[0].mxu0 %v426
      %v619 = vpop.f32.mrb[0].mxu0
      %v620 = vadd.f32 %v386, %v619
      %v621 = vpop.f32.mrb[0].mxu0
      %v622 = vpop.f32.mrb[0].mxu0
      %v623 = vadd.f32 %v386, %v622
      %v624 = vpop.f32.mrb[0].mxu0
      %625 = vmatprep.mubr.bf16.mxu0 0
      %626 = vmatmul.mubr.bf16.gmra.mrb[0].mxu0 %v429
      %v627 = vpop.f32.mrb[0].mxu0
      %v628 = vadd.f32 %v386, %v627
      %v629 = vpop.f32.mrb[0].mxu0
      %v630 = vpop.f32.mrb[0].mxu0
      %v631 = vadd.f32 %v386, %v630
      %v632 = vpop.f32.mrb[0].mxu0
      %633 = vmatprep.mubr.bf16.mxu0 0
      %634 = vmatmul.mubr.bf16.gmra.mrb[0].mxu0 %v432
      %v635 = vpop.f32.mrb[0].mxu0
      %v636 = vadd.f32 %v386, %v635
      %v637 = vpop.f32.mrb[0].mxu0
      %v638 = vpop.f32.mrb[0].mxu0
      %v639 = vadd.f32 %v386, %v638
      %v640 = vpop.f32.mrb[0].mxu0
      %641 = vmatprep.mubr.bf16.mxu0 0
      %642 = vmatmul.mubr.bf16.gmra.mrb[0].mxu0 %v435
      %v643 = vpop.f32.mrb[0].mxu0
      %v644 = vadd.f32 %v386, %v643
      %v645 = vpop.f32.mrb[0].mxu0
      %v646 = vpop.f32.mrb[0].mxu0
      %v647 = vadd.f32 %v386, %v646
      %v648 = vpop.f32.mrb[0].mxu0
      %649 = vmatprep.mubr.bf16.mxu0 0
      %650 = vmatmul.mubr.bf16.gmra.mrb[0].mxu0 %v438
      %v651 = vpop.f32.mrb[0].mxu0
      %v652 = vadd.f32 %v386, %v651
      %v653 = vpop.f32.mrb[0].mxu0
      %v654 = vpop.f32.mrb[0].mxu0
      %v655 = vadd.f32 %v386, %v654
      %v656 = vpop.f32.mrb[0].mxu0
      %657 = vmatprep.mubr.bf16.mxu0 0
      %658 = vmatmul.mubr.bf16.gmra.mrb[0].mxu0 %v441
      %v659 = vpop.f32.mrb[0].mxu0
      %v660 = vadd.f32 %v386, %v659
      %v661 = vpop.f32.mrb[0].mxu0
      %v662 = vpop.f32.mrb[0].mxu0
      %v663 = vadd.f32 %v386, %v662
      %v664 = vpop.f32.mrb[0].mxu0
      %665 = vmatprep.mubr.bf16.mxu0 0
      %666 = vmatmul.mubr.bf16.gmra.mrb[0].mxu0 %v444
      %v667 = vpop.f32.mrb[0].mxu0
      %v668 = vadd.f32 %v386, %v667
      %v669 = vpop.f32.mrb[0].mxu0
      %v670 = vpop.f32.mrb[0].mxu0
      %v671 = vadd.f32 %v386, %v670
      %v672 = vpop.f32.mrb[0].mxu0
      %673 = vmatprep.mubr.bf16.mxu0 0
      %674 = vmatmul.mubr.bf16.gmra.mrb[0].mxu0 %v447
      %v675 = vpop.f32.mrb[0].mxu0
      %v676 = vadd.f32 %v386, %v675
      %v677 = vpop.f32.mrb[0].mxu0
      %v678 = vpop.f32.mrb[0].mxu0
      %v679 = vadd.f32 %v386, %v678
      %v680 = vpop.f32.mrb[0].mxu0
      %681 = vmatprep.mubr.bf16.mxu0 0
      %682 = vmatmul.mubr.bf16.gmra.mrb[0].mxu0 %v450
      %v683 = vpop.f32.mrb[0].mxu0
      %v684 = vadd.f32 %v386, %v683
      %v685 = vpop.f32.mrb[0].mxu0
      %v686 = vpop.f32.mrb[0].mxu0
      %v687 = vadd.f32 %v386, %v686
      %v688 = vpop.f32.mrb[0].mxu0
      %689 = vmatprep.mubr.bf16.mxu0 0
      %690 = vmatmul.mubr.bf16.gmra.mrb[0].mxu0 %v453
      %v691 = vpop.f32.mrb[0].mxu0
      %v692 = vadd.f32 %v386, %v691
      %v693 = vpop.f32.mrb[0].mxu0
      %v694 = vpop.f32.mrb[0].mxu0
      %v695 = vadd.f32 %v386, %v694
      %v696 = vpop.f32.mrb[0].mxu0
      %697 = vmatprep.mubr.bf16.mxu0 0
      %698 = vmatmul.mubr.bf16.gmra.mrb[0].mxu0 %v456
      %v699 = vpop.f32.mrb[0].mxu0
      %v700 = vadd.f32 %v386, %v699
      %v701 = vpop.f32.mrb[0].mxu0
      %v702 = vpop.f32.mrb[0].mxu0
      %v703 = vadd.f32 %v386, %v702
      %v704 = vpop.f32.mrb[0].mxu0
      %705 = vmatprep.mubr.bf16.mxu0 0
      %706 = vmatmul.mubr.bf16.gmra.mrb[0].mxu0 %v459
      %v707 = vpop.f32.mrb[0].mxu0
      %v708 = vadd.f32 %v386, %v707
      %v709 = vpop.f32.mrb[0].mxu0
      %v710 = vpop.f32.mrb[0].mxu0
      %v711 = vadd.f32 %v386, %v710
      %v712 = vpop.f32.mrb[0].mxu0
      %713 = vmatprep.mubr.bf16.mxu0 0
      %714 = vmatmul.mubr.bf16.gmra.mrb[0].mxu0 %v462
      %v715 = vpop.f32.mrb[0].mxu0
      %v716 = vadd.f32 %v386, %v715
      %v717 = vpop.f32.mrb[0].mxu0
      %v718 = vpop.f32.mrb[0].mxu0
      %v719 = vadd.f32 %v386, %v718
      %v720 = vpop.f32.mrb[0].mxu0
      %721 = vmatprep.mubr.bf16.mxu0 0
      %722 = vmatmul.mubr.bf16.gmra.mrb[0].mxu0 %v465
      %v723 = vpop.f32.mrb[0].mxu0
      %v724 = vadd.f32 %v386, %v723
      %v725 = vpop.f32.mrb[0].mxu0
      %v726 = vpop.f32.mrb[0].mxu0
      %v727 = vadd.f32 %v386, %v726
      %v728 = vpop.f32.mrb[0].mxu0
      %729 = vmatprep.mubr.bf16.mxu0 0
      %730 = vmatmul.mubr.bf16.gmra.mrb[0].mxu0 %v468
      %v731 = vpop.f32.mrb[0].mxu0
      %v732 = vadd.f32 %v386, %v731
      %v733 = vpop.f32.mrb[0].mxu0
      %v734 = vpop.f32.mrb[0].mxu0
      %v735 = vadd.f32 %v386, %v734
      %v736 = vpop.f32.mrb[0].mxu0
      %737 = vmatprep.mubr.bf16.mxu0 0
      %738 = vmatmul.mubr.bf16.gmra.mrb[0].mxu0 %v471
      %v739 = vpop.f32.mrb[0].mxu0
      %v740 = vadd.f32 %v386, %v739
      %v741 = vpop.f32.mrb[0].mxu0
      %v742 = vpop.f32.mrb[0].mxu0
      %v743 = vadd.f32 %v386, %v742
      %v744 = vpop.f32.mrb[0].mxu0
      %745 = vmatprep.mubr.bf16.mxu0 0
      %746 = vmatmul.mubr.bf16.gmra.mrb[0].mxu0 %v474
      %v747 = vpop.f32.mrb[0].mxu0
      %v748 = vadd.f32 %v386, %v747
      %v749 = vpop.f32.mrb[0].mxu0
      %v750 = vpop.f32.mrb[0].mxu0
      %v751 = vadd.f32 %v386, %v750
      %v752 = vpop.f32.mrb[0].mxu0
      %753 = vmatprep.mubr.bf16.mxu0 0
      %754 = vmatmul.mubr.bf16.gmra.mrb[0].mxu0 %v477
      %v755 = vpop.f32.mrb[0].mxu0
      %v756 = vadd.f32 %v386, %v755
      %v757 = vpop.f32.mrb[0].mxu0
      %v758 = vpop.f32.mrb[0].mxu0
      %v759 = vadd.f32 %v386, %v758
      %v760 = vpop.f32.mrb[0].mxu0
      %761 = vmatprep.mubr.bf16.mxu0 0
      %762 = vmatmul.mubr.bf16.gmra.mrb[0].mxu0 %v480
      %v763 = vpop.f32.mrb[0].mxu0
      %v764 = vadd.f32 %v386, %v763
      %v765 = vpop.f32.mrb[0].mxu0
      %v766 = vpop.f32.mrb[0].mxu0
      %v767 = vadd.f32 %v386, %v766
      %v768 = vpop.f32.mrb[0].mxu0
      %769 = vmatprep.mubr.bf16.mxu0 0
      %770 = vmatmul.mubr.bf16.gmra.mrb[0].mxu0 %v483
      %v771 = vpop.f32.mrb[0].mxu0
      %v772 = vadd.f32 %v386, %v771
      %v773 = vpop.f32.mrb[0].mxu0
      %v774 = vpop.f32.mrb[0].mxu0
      %v775 = vadd.f32 %v386, %v774
      %v776 = vpop.f32.mrb[0].mxu0
      %777 = vdwg.mxu0
      %v778 = vmax.f32 %v524, 0.0
      %v779 = vmax.f32 %v527, 0.0
      %v780 = vmax.f32 %v532, 0.0
      %v781 = vmax.f32 %v535, 0.0
      %v782 = vmax.f32 %v540, 0.0
      %v783 = vmax.f32 %v543, 0.0
      %v784 = vmax.f32 %v548, 0.0
      %v785 = vmax.f32 %v551, 0.0
      %v786 = vmax.f32 %v556, 0.0
      %v787 = vmax.f32 %v559, 0.0
      %v788 = vmax.f32 %v564, 0.0
      %v789 = vmax.f32 %v567, 0.0
      %v790 = vmax.f32 %v572, 0.0
      %v791 = vmax.f32 %v575, 0.0
      %v792 = vmax.f32 %v580, 0.0
      %v793 = vmax.f32 %v583, 0.0
      %v794 = vmax.f32 %v588, 0.0
      %v795 = vmax.f32 %v591, 0.0
      %v796 = vmax.f32 %v596, 0.0
      %v797 = vmax.f32 %v599, 0.0
      %v798 = vmax.f32 %v604, 0.0
      %v799 = vmax.f32 %v607, 0.0
      %v800 = vmax.f32 %v612, 0.0
      %v801 = vmax.f32 %v615, 0.0
      %v802 = vmax.f32 %v620, 0.0
      %v803 = vmax.f32 %v623, 0.0
      %v804 = vmax.f32 %v628, 0.0
      %v805 = vmax.f32 %v631, 0.0
      %v806 = vmax.f32 %v636, 0.0
      %v807 = vmax.f32 %v639, 0.0
      %v808 = vmax.f32 %v644, 0.0
      %v809 = vmax.f32 %v647, 0.0
      %v810 = vmax.f32 %v652, 0.0
      %v811 = vmax.f32 %v655, 0.0
      %v812 = vmax.f32 %v660, 0.0
      %v813 = vmax.f32 %v663, 0.0
      %v814 = vmax.f32 %v668, 0.0
      %v815 = vmax.f32 %v671, 0.0
      %v816 = vmax.f32 %v676, 0.0
      %v817 = vmax.f32 %v679, 0.0
      %v818 = vmax.f32 %v684, 0.0
      %v819 = vmax.f32 %v687, 0.0
      %v820 = vmax.f32 %v692, 0.0
      %v821 = vmax.f32 %v695, 0.0
      %v822 = vmax.f32 %v700, 0.0
      %v823 = vmax.f32 %v703, 0.0
      %v824 = vmax.f32 %v708, 0.0
      %v825 = vmax.f32 %v711, 0.0
      %v826 = vmax.f32 %v716, 0.0
      %v827 = vmax.f32 %v719, 0.0
      %v828 = vmax.f32 %v724, 0.0
      %v829 = vmax.f32 %v727, 0.0
      %v830 = vmax.f32 %v732, 0.0
      %v831 = vmax.f32 %v735, 0.0
      %v832 = vmax.f32 %v740, 0.0
      %v833 = vmax.f32 %v743, 0.0
      %v834 = vmax.f32 %v748, 0.0
      %v835 = vmax.f32 %v751, 0.0
      %v836 = vmax.f32 %v756, 0.0
      %v837 = vmax.f32 %v759, 0.0
      %v838 = vmax.f32 %v764, 0.0
      %v839 = vmax.f32 %v767, 0.0
      %v840 = vmax.f32 %v772, 0.0
      %v841 = vmax.f32 %v775, 0.0
      %v842 = vpack.c.bf16 %v779, %v778
      %v843 = vpack.c.bf16 %v781, %v780
      %v844 = vpack.c.bf16 %v783, %v782
      %v845 = vpack.c.bf16 %v785, %v784
      %v846 = vpack.c.bf16 %v787, %v786
      %v847 = vpack.c.bf16 %v789, %v788
      %v848 = vpack.c.bf16 %v791, %v790
      %v849 = vpack.c.bf16 %v793, %v792
      %v850 = vpack.c.bf16 %v795, %v794
      %v851 = vpack.c.bf16 %v797, %v796
      %v852 = vpack.c.bf16 %v799, %v798
      %v853 = vpack.c.bf16 %v801, %v800
      %v854 = vpack.c.bf16 %v803, %v802
      %v855 = vpack.c.bf16 %v805, %v804
      %v856 = vpack.c.bf16 %v807, %v806
      %v857 = vpack.c.bf16 %v809, %v808
      %v858 = vpack.c.bf16 %v811, %v810
      %v859 = vpack.c.bf16 %v813, %v812
      %v860 = vpack.c.bf16 %v815, %v814
      %v861 = vpack.c.bf16 %v817, %v816
      %v862 = vpack.c.bf16 %v819, %v818
      %v863 = vpack.c.bf16 %v821, %v820
      %v864 = vpack.c.bf16 %v823, %v822
      %v865 = vpack.c.bf16 %v825, %v824
      %v866 = vpack.c.bf16 %v827, %v826
      %v867 = vpack.c.bf16 %v829, %v828
      %v868 = vpack.c.bf16 %v831, %v830
      %v869 = vpack.c.bf16 %v833, %v832
      %v870 = vpack.c.bf16 %v835, %v834
      %v871 = vpack.c.bf16 %v837, %v836
      %v872 = vpack.c.bf16 %v839, %v838
      %v873 = vpack.c.bf16 %v841, %v840
      %v874 = vld [vmem:[%s3] sm:$0xff]
      %v875 = vld [vmem:[%s3 + $0x8] sm:$0xff]
      %v876 = vpack.c.bf16 %v875, %v874
      %v877 = vld [vmem:[%s4] sm:$0x1]
      %v879 = vlaneseq
      %v880 = vshrl.u32 %v879, 7
      %v881 = vsub.s32 0, %v880
      %v882 = vrot.slane %v877, %v881
      %vm884 = vcmask 130048
      %v886 = vsel %vm884, %v842, 0
      %v889 = vsel %vm884, %v843, 0
      %v892 = vsel %vm884, %v844, 0
      %v895 = vsel %vm884, %v845, 0
      %v898 = vsel %vm884, %v846, 0
      %v901 = vsel %vm884, %v847, 0
      %v904 = vsel %vm884, %v848, 0
      %v907 = vsel %vm884, %v849, 0
      %v910 = vsel %vm884, %v850, 0
      %v913 = vsel %vm884, %v851, 0
      %v916 = vsel %vm884, %v852, 0
      %v919 = vsel %vm884, %v853, 0
      %v922 = vsel %vm884, %v854, 0
      %v925 = vsel %vm884, %v855, 0
      %v928 = vsel %vm884, %v856, 0
      %v931 = vsel %vm884, %v857, 0
      %v934 = vsel %vm884, %v858, 0
      %v937 = vsel %vm884, %v859, 0
      %v940 = vsel %vm884, %v860, 0
      %v943 = vsel %vm884, %v861, 0
      %v946 = vsel %vm884, %v862, 0
      %v949 = vsel %vm884, %v863, 0
      %v952 = vsel %vm884, %v864, 0
      %v955 = vsel %vm884, %v865, 0
      %v958 = vsel %vm884, %v866, 0
      %v961 = vsel %vm884, %v867, 0
      %v964 = vsel %vm884, %v868, 0
      %v967 = vsel %vm884, %v869, 0
      %v970 = vsel %vm884, %v870, 0
      %v973 = vsel %vm884, %v871, 0
      %v976 = vsel %vm884, %v872, 0
      %v979 = vsel %vm884, %v873, 0
      %981 = vmatprep.subr.bf16.mxu0 0
      %982 = vmatpush1.bf16.msra.mxu0 %v876
      %983 = vmatprep.subr.bf16.mxu0 0
      %984 = vmatpush1.bf16.msra.mxu0 0
      %985 = vmatprep.subr.bf16.mxu0 0
      %986 = vmatpush1.bf16.msra.mxu0 0
      %987 = vmatprep.subr.bf16.mxu0 0
      %988 = vmatpush1.bf16.msra.mxu0 0
      %989 = vmatprep.subr.bf16.mxu0 0
      %990 = vmatpush1.bf16.msra.mxu0 0
      %991 = vmatprep.subr.bf16.mxu0 0
      %992 = vmatpush1.bf16.msra.mxu0 0
      %993 = vmatprep.subr.bf16.mxu0 0
      %994 = vmatpush1.bf16.msra.mxu0 0
      %995 = vmatprep.subr.bf16.mxu0 0
      %996 = vmatpush1.bf16.msra.mxu0 0
      %997 = vmatprep.subr.bf16.mxu0 0
      %998 = vmatpush1.bf16.msra.mxu0 0
      %999 = vmatprep.subr.bf16.mxu0 0
      %1000 = vmatpush1.bf16.msra.mxu0 0
      %1001 = vmatprep.subr.bf16.mxu0 0
      %1002 = vmatpush1.bf16.msra.mxu0 0
      %1003 = vmatprep.subr.bf16.mxu0 0
      %1004 = vmatpush1.bf16.msra.mxu0 0
      %1005 = vmatprep.subr.bf16.mxu0 0
      %1006 = vmatpush1.bf16.msra.mxu0 0
      %1007 = vmatprep.subr.bf16.mxu0 0
      %1008 = vmatpush1.bf16.msra.mxu0 0
      %1009 = vmatprep.subr.bf16.mxu0 0
      %1010 = vmatpush1.bf16.msra.mxu0 0
      %1011 = vmatprep.subr.bf16.mxu0 0
      %1012 = vmatpush1.bf16.msra.mxu0 0
      %1013 = vmatprep.mubr.bf16.mxu0 0
      %1014 = vmatmul.mubr.bf16.gmra.mrb[0].mxu0 %v886
      %v1015 = vpop.f32.mrb[0].mxu0
      %v1016 = vadd.f32 %v882, %v1015
      %v1017 = vpop.f32.mrb[0].mxu0
      %v1018 = vpop.f32.mrb[0].mxu0
      %v1019 = vadd.f32 %v882, %v1018
      %v1020 = vpop.f32.mrb[0].mxu0
      %1021 = vmatprep.mubr.bf16.mxu0 0
      %1022 = vmatmul.mubr.bf16.gmra.mrb[0].mxu0 %v889
      %v1023 = vpop.f32.mrb[0].mxu0
      %v1024 = vadd.f32 %v882, %v1023
      %v1025 = vpop.f32.mrb[0].mxu0
      %v1026 = vpop.f32.mrb[0].mxu0
      %v1027 = vadd.f32 %v882, %v1026
      %v1028 = vpop.f32.mrb[0].mxu0
      %1029 = vmatprep.mubr.bf16.mxu0 0
      %1030 = vmatmul.mubr.bf16.gmra.mrb[0].mxu0 %v892
      %v1031 = vpop.f32.mrb[0].mxu0
      %v1032 = vadd.f32 %v882, %v1031
      %v1033 = vpop.f32.mrb[0].mxu0
      %v1034 = vpop.f32.mrb[0].mxu0
      %v1035 = vadd.f32 %v882, %v1034
      %v1036 = vpop.f32.mrb[0].mxu0
      %1037 = vmatprep.mubr.bf16.mxu0 0
      %1038 = vmatmul.mubr.bf16.gmra.mrb[0].mxu0 %v895
      %v1039 = vpop.f32.mrb[0].mxu0
      %v1040 = vadd.f32 %v882, %v1039
      %v1041 = vpop.f32.mrb[0].mxu0
      %v1042 = vpop.f32.mrb[0].mxu0
      %v1043 = vadd.f32 %v882, %v1042
      %v1044 = vpop.f32.mrb[0].mxu0
      %1045 = vmatprep.mubr.bf16.mxu0 0
      %1046 = vmatmul.mubr.bf16.gmra.mrb[0].mxu0 %v898
      %v1047 = vpop.f32.mrb[0].mxu0
      %v1048 = vadd.f32 %v882, %v1047
      %v1049 = vpop.f32.mrb[0].mxu0
      %v1050 = vpop.f32.mrb[0].mxu0
      %v1051 = vadd.f32 %v882, %v1050
      %v1052 = vpop.f32.mrb[0].mxu0
      %1053 = vmatprep.mubr.bf16.mxu0 0
      %1054 = vmatmul.mubr.bf16.gmra.mrb[0].mxu0 %v901
      %v1055 = vpop.f32.mrb[0].mxu0
      %v1056 = vadd.f32 %v882, %v1055
      %v1057 = vpop.f32.mrb[0].mxu0
      %v1058 = vpop.f32.mrb[0].mxu0
      %v1059 = vadd.f32 %v882, %v1058
      %v1060 = vpop.f32.mrb[0].mxu0
      %1061 = vmatprep.mubr.bf16.mxu0 0
      %1062 = vmatmul.mubr.bf16.gmra.mrb[0].mxu0 %v904
      %v1063 = vpop.f32.mrb[0].mxu0
      %v1064 = vadd.f32 %v882, %v1063
      %v1065 = vpop.f32.mrb[0].mxu0
      %v1066 = vpop.f32.mrb[0].mxu0
      %v1067 = vadd.f32 %v882, %v1066
      %v1068 = vpop.f32.mrb[0].mxu0
      %1069 = vmatprep.mubr.bf16.mxu0 0
      %1070 = vmatmul.mubr.bf16.gmra.mrb[0].mxu0 %v907
      %v1071 = vpop.f32.mrb[0].mxu0
      %v1072 = vadd.f32 %v882, %v1071
      %v1073 = vpop.f32.mrb[0].mxu0
      %v1074 = vpop.f32.mrb[0].mxu0
      %v1075 = vadd.f32 %v882, %v1074
      %v1076 = vpop.f32.mrb[0].mxu0
      %1077 = vmatprep.mubr.bf16.mxu0 0
      %1078 = vmatmul.mubr.bf16.gmra.mrb[0].mxu0 %v910
      %v1079 = vpop.f32.mrb[0].mxu0
      %v1080 = vadd.f32 %v882, %v1079
      %v1081 = vpop.f32.mrb[0].mxu0
      %v1082 = vpop.f32.mrb[0].mxu0
      %v1083 = vadd.f32 %v882, %v1082
      %v1084 = vpop.f32.mrb[0].mxu0
      %1085 = vmatprep.mubr.bf16.mxu0 0
      %1086 = vmatmul.mubr.bf16.gmra.mrb[0].mxu0 %v913
      %v1087 = vpop.f32.mrb[0].mxu0
      %v1088 = vadd.f32 %v882, %v1087
      %v1089 = vpop.f32.mrb[0].mxu0
      %v1090 = vpop.f32.mrb[0].mxu0
      %v1091 = vadd.f32 %v882, %v1090
      %v1092 = vpop.f32.mrb[0].mxu0
      %1093 = vmatprep.mubr.bf16.mxu0 0
      %1094 = vmatmul.mubr.bf16.gmra.mrb[0].mxu0 %v916
      %v1095 = vpop.f32.mrb[0].mxu0
      %v1096 = vadd.f32 %v882, %v1095
      %v1097 = vpop.f32.mrb[0].mxu0
      %v1098 = vpop.f32.mrb[0].mxu0
      %v1099 = vadd.f32 %v882, %v1098
      %v1100 = vpop.f32.mrb[0].mxu0
      %1101 = vmatprep.mubr.bf16.mxu0 0
      %1102 = vmatmul.mubr.bf16.gmra.mrb[0].mxu0 %v919
      %v1103 = vpop.f32.mrb[0].mxu0
      %v1104 = vadd.f32 %v882, %v1103
      %v1105 = vpop.f32.mrb[0].mxu0
      %v1106 = vpop.f32.mrb[0].mxu0
      %v1107 = vadd.f32 %v882, %v1106
      %v1108 = vpop.f32.mrb[0].mxu0
      %1109 = vmatprep.mubr.bf16.mxu0 0
      %1110 = vmatmul.mubr.bf16.gmra.mrb[0].mxu0 %v922
      %v1111 = vpop.f32.mrb[0].mxu0
      %v1112 = vadd.f32 %v882, %v1111
      %v1113 = vpop.f32.mrb[0].mxu0
      %v1114 = vpop.f32.mrb[0].mxu0
      %v1115 = vadd.f32 %v882, %v1114
      %v1116 = vpop.f32.mrb[0].mxu0
      %1117 = vmatprep.mubr.bf16.mxu0 0
      %1118 = vmatmul.mubr.bf16.gmra.mrb[0].mxu0 %v925
      %v1119 = vpop.f32.mrb[0].mxu0
      %v1120 = vadd.f32 %v882, %v1119
      %v1121 = vpop.f32.mrb[0].mxu0
      %v1122 = vpop.f32.mrb[0].mxu0
      %v1123 = vadd.f32 %v882, %v1122
      %v1124 = vpop.f32.mrb[0].mxu0
      %1125 = vmatprep.mubr.bf16.mxu0 0
      %1126 = vmatmul.mubr.bf16.gmra.mrb[0].mxu0 %v928
      %v1127 = vpop.f32.mrb[0].mxu0
      %v1128 = vadd.f32 %v882, %v1127
      %v1129 = vpop.f32.mrb[0].mxu0
      %v1130 = vpop.f32.mrb[0].mxu0
      %v1131 = vadd.f32 %v882, %v1130
      %v1132 = vpop.f32.mrb[0].mxu0
      %1133 = vmatprep.mubr.bf16.mxu0 0
      %1134 = vmatmul.mubr.bf16.gmra.mrb[0].mxu0 %v931
      %v1135 = vpop.f32.mrb[0].mxu0
      %v1136 = vadd.f32 %v882, %v1135
      %v1137 = vpop.f32.mrb[0].mxu0
      %v1138 = vpop.f32.mrb[0].mxu0
      %v1139 = vadd.f32 %v882, %v1138
      %v1140 = vpop.f32.mrb[0].mxu0
      %1141 = vmatprep.mubr.bf16.mxu0 0
      %1142 = vmatmul.mubr.bf16.gmra.mrb[0].mxu0 %v934
      %v1143 = vpop.f32.mrb[0].mxu0
      %v1144 = vadd.f32 %v882, %v1143
      %v1145 = vpop.f32.mrb[0].mxu0
      %v1146 = vpop.f32.mrb[0].mxu0
      %v1147 = vadd.f32 %v882, %v1146
      %v1148 = vpop.f32.mrb[0].mxu0
      %1149 = vmatprep.mubr.bf16.mxu0 0
      %1150 = vmatmul.mubr.bf16.gmra.mrb[0].mxu0 %v937
      %v1151 = vpop.f32.mrb[0].mxu0
      %v1152 = vadd.f32 %v882, %v1151
      %v1153 = vpop.f32.mrb[0].mxu0
      %v1154 = vpop.f32.mrb[0].mxu0
      %v1155 = vadd.f32 %v882, %v1154
      %v1156 = vpop.f32.mrb[0].mxu0
      %1157 = vmatprep.mubr.bf16.mxu0 0
      %1158 = vmatmul.mubr.bf16.gmra.mrb[0].mxu0 %v940
      %v1159 = vpop.f32.mrb[0].mxu0
      %v1160 = vadd.f32 %v882, %v1159
      %v1161 = vpop.f32.mrb[0].mxu0
      %v1162 = vpop.f32.mrb[0].mxu0
      %v1163 = vadd.f32 %v882, %v1162
      %v1164 = vpop.f32.mrb[0].mxu0
      %1165 = vmatprep.mubr.bf16.mxu0 0
      %1166 = vmatmul.mubr.bf16.gmra.mrb[0].mxu0 %v943
      %v1167 = vpop.f32.mrb[0].mxu0
      %v1168 = vadd.f32 %v882, %v1167
      %v1169 = vpop.f32.mrb[0].mxu0
      %v1170 = vpop.f32.mrb[0].mxu0
      %v1171 = vadd.f32 %v882, %v1170
      %v1172 = vpop.f32.mrb[0].mxu0
      %1173 = vmatprep.mubr.bf16.mxu0 0
      %1174 = vmatmul.mubr.bf16.gmra.mrb[0].mxu0 %v946
      %v1175 = vpop.f32.mrb[0].mxu0
      %v1176 = vadd.f32 %v882, %v1175
      %v1177 = vpop.f32.mrb[0].mxu0
      %v1178 = vpop.f32.mrb[0].mxu0
      %v1179 = vadd.f32 %v882, %v1178
      %v1180 = vpop.f32.mrb[0].mxu0
      %1181 = vmatprep.mubr.bf16.mxu0 0
      %1182 = vmatmul.mubr.bf16.gmra.mrb[0].mxu0 %v949
      %v1183 = vpop.f32.mrb[0].mxu0
      %v1184 = vadd.f32 %v882, %v1183
      %v1185 = vpop.f32.mrb[0].mxu0
      %v1186 = vpop.f32.mrb[0].mxu0
      %v1187 = vadd.f32 %v882, %v1186
      %v1188 = vpop.f32.mrb[0].mxu0
      %1189 = vmatprep.mubr.bf16.mxu0 0
      %1190 = vmatmul.mubr.bf16.gmra.mrb[0].mxu0 %v952
      %v1191 = vpop.f32.mrb[0].mxu0
      %v1192 = vadd.f32 %v882, %v1191
      %v1193 = vpop.f32.mrb[0].mxu0
      %v1194 = vpop.f32.mrb[0].mxu0
      %v1195 = vadd.f32 %v882, %v1194
      %v1196 = vpop.f32.mrb[0].mxu0
      %1197 = vmatprep.mubr.bf16.mxu0 0
      %1198 = vmatmul.mubr.bf16.gmra.mrb[0].mxu0 %v955
      %v1199 = vpop.f32.mrb[0].mxu0
      %v1200 = vadd.f32 %v882, %v1199
      %v1201 = vpop.f32.mrb[0].mxu0
      %v1202 = vpop.f32.mrb[0].mxu0
      %v1203 = vadd.f32 %v882, %v1202
      %v1204 = vpop.f32.mrb[0].mxu0
      %1205 = vmatprep.mubr.bf16.mxu0 0
      %1206 = vmatmul.mubr.bf16.gmra.mrb[0].mxu0 %v958
      %v1207 = vpop.f32.mrb[0].mxu0
      %v1208 = vadd.f32 %v882, %v1207
      %v1209 = vpop.f32.mrb[0].mxu0
      %v1210 = vpop.f32.mrb[0].mxu0
      %v1211 = vadd.f32 %v882, %v1210
      %v1212 = vpop.f32.mrb[0].mxu0
      %1213 = vmatprep.mubr.bf16.mxu0 0
      %1214 = vmatmul.mubr.bf16.gmra.mrb[0].mxu0 %v961
      %v1215 = vpop.f32.mrb[0].mxu0
      %v1216 = vadd.f32 %v882, %v1215
      %v1217 = vpop.f32.mrb[0].mxu0
      %v1218 = vpop.f32.mrb[0].mxu0
      %v1219 = vadd.f32 %v882, %v1218
      %v1220 = vpop.f32.mrb[0].mxu0
      %1221 = vmatprep.mubr.bf16.mxu0 0
      %1222 = vmatmul.mubr.bf16.gmra.mrb[0].mxu0 %v964
      %v1223 = vpop.f32.mrb[0].mxu0
      %v1224 = vadd.f32 %v882, %v1223
      %v1225 = vpop.f32.mrb[0].mxu0
      %v1226 = vpop.f32.mrb[0].mxu0
      %v1227 = vadd.f32 %v882, %v1226
      %v1228 = vpop.f32.mrb[0].mxu0
      %1229 = vmatprep.mubr.bf16.mxu0 0
      %1230 = vmatmul.mubr.bf16.gmra.mrb[0].mxu0 %v967
      %v1231 = vpop.f32.mrb[0].mxu0
      %v1232 = vadd.f32 %v882, %v1231
      %v1233 = vpop.f32.mrb[0].mxu0
      %v1234 = vpop.f32.mrb[0].mxu0
      %v1235 = vadd.f32 %v882, %v1234
      %v1236 = vpop.f32.mrb[0].mxu0
      %1237 = vmatprep.mubr.bf16.mxu0 0
      %1238 = vmatmul.mubr.bf16.gmra.mrb[0].mxu0 %v970
      %v1239 = vpop.f32.mrb[0].mxu0
      %v1240 = vadd.f32 %v882, %v1239
      %v1241 = vpop.f32.mrb[0].mxu0
      %v1242 = vpop.f32.mrb[0].mxu0
      %v1243 = vadd.f32 %v882, %v1242
      %v1244 = vpop.f32.mrb[0].mxu0
      %1245 = vmatprep.mubr.bf16.mxu0 0
      %1246 = vmatmul.mubr.bf16.gmra.mrb[0].mxu0 %v973
      %v1247 = vpop.f32.mrb[0].mxu0
      %v1248 = vadd.f32 %v882, %v1247
      %v1249 = vpop.f32.mrb[0].mxu0
      %v1250 = vpop.f32.mrb[0].mxu0
      %v1251 = vadd.f32 %v882, %v1250
      %v1252 = vpop.f32.mrb[0].mxu0
      %1253 = vmatprep.mubr.bf16.mxu0 0
      %1254 = vmatmul.mubr.bf16.gmra.mrb[0].mxu0 %v976
      %v1255 = vpop.f32.mrb[0].mxu0
      %v1256 = vadd.f32 %v882, %v1255
      %v1257 = vpop.f32.mrb[0].mxu0
      %v1258 = vpop.f32.mrb[0].mxu0
      %v1259 = vadd.f32 %v882, %v1258
      %v1260 = vpop.f32.mrb[0].mxu0
      %1261 = vmatprep.mubr.bf16.mxu0 0
      %1262 = vmatmul.mubr.bf16.gmra.mrb[0].mxu0 %v979
      %v1263 = vpop.f32.mrb[0].mxu0
      %v1264 = vadd.f32 %v882, %v1263
      %v1265 = vpop.f32.mrb[0].mxu0
      %v1266 = vpop.f32.mrb[0].mxu0
      %v1267 = vadd.f32 %v882, %v1266
      %v1268 = vpop.f32.mrb[0].mxu0
      %1269 = vdwg.mxu0
      %v1270 = vmax.f32 %v1016, 0.0
      %v1271 = vmax.f32 %v1019, 0.0
      %v1272 = vmax.f32 %v1024, 0.0
      %v1273 = vmax.f32 %v1027, 0.0
      %v1274 = vmax.f32 %v1032, 0.0
      %v1275 = vmax.f32 %v1035, 0.0
      %v1276 = vmax.f32 %v1040, 0.0
      %v1277 = vmax.f32 %v1043, 0.0
      %v1278 = vmax.f32 %v1048, 0.0
      %v1279 = vmax.f32 %v1051, 0.0
      %v1280 = vmax.f32 %v1056, 0.0
      %v1281 = vmax.f32 %v1059, 0.0
      %v1282 = vmax.f32 %v1064, 0.0
      %v1283 = vmax.f32 %v1067, 0.0
      %v1284 = vmax.f32 %v1072, 0.0
      %v1285 = vmax.f32 %v1075, 0.0
      %v1286 = vmax.f32 %v1080, 0.0
      %v1287 = vmax.f32 %v1083, 0.0
      %v1288 = vmax.f32 %v1088, 0.0
      %v1289 = vmax.f32 %v1091, 0.0
      %v1290 = vmax.f32 %v1096, 0.0
      %v1291 = vmax.f32 %v1099, 0.0
      %v1292 = vmax.f32 %v1104, 0.0
      %v1293 = vmax.f32 %v1107, 0.0
      %v1294 = vmax.f32 %v1112, 0.0
      %v1295 = vmax.f32 %v1115, 0.0
      %v1296 = vmax.f32 %v1120, 0.0
      %v1297 = vmax.f32 %v1123, 0.0
      %v1298 = vmax.f32 %v1128, 0.0
      %v1299 = vmax.f32 %v1131, 0.0
      %v1300 = vmax.f32 %v1136, 0.0
      %v1301 = vmax.f32 %v1139, 0.0
      %v1302 = vmax.f32 %v1144, 0.0
      %v1303 = vmax.f32 %v1147, 0.0
      %v1304 = vmax.f32 %v1152, 0.0
      %v1305 = vmax.f32 %v1155, 0.0
      %v1306 = vmax.f32 %v1160, 0.0
      %v1307 = vmax.f32 %v1163, 0.0
      %v1308 = vmax.f32 %v1168, 0.0
      %v1309 = vmax.f32 %v1171, 0.0
      %v1310 = vmax.f32 %v1176, 0.0
      %v1311 = vmax.f32 %v1179, 0.0
      %v1312 = vmax.f32 %v1184, 0.0
      %v1313 = vmax.f32 %v1187, 0.0
      %v1314 = vmax.f32 %v1192, 0.0
      %v1315 = vmax.f32 %v1195, 0.0
      %v1316 = vmax.f32 %v1200, 0.0
      %v1317 = vmax.f32 %v1203, 0.0
      %v1318 = vmax.f32 %v1208, 0.0
      %v1319 = vmax.f32 %v1211, 0.0
      %v1320 = vmax.f32 %v1216, 0.0
      %v1321 = vmax.f32 %v1219, 0.0
      %v1322 = vmax.f32 %v1224, 0.0
      %v1323 = vmax.f32 %v1227, 0.0
      %v1324 = vmax.f32 %v1232, 0.0
      %v1325 = vmax.f32 %v1235, 0.0
      %v1326 = vmax.f32 %v1240, 0.0
      %v1327 = vmax.f32 %v1243, 0.0
      %v1328 = vmax.f32 %v1248, 0.0
      %v1329 = vmax.f32 %v1251, 0.0
      %v1330 = vmax.f32 %v1256, 0.0
      %v1331 = vmax.f32 %v1259, 0.0
      %v1332 = vmax.f32 %v1264, 0.0
      %v1333 = vmax.f32 %v1267, 0.0
      %v1334 = vpack.c.bf16 %v1271, %v1270
      %v1335 = vpack.c.bf16 %v1273, %v1272
      %v1336 = vpack.c.bf16 %v1275, %v1274
      %v1337 = vpack.c.bf16 %v1277, %v1276
      %v1338 = vpack.c.bf16 %v1279, %v1278
      %v1339 = vpack.c.bf16 %v1281, %v1280
      %v1340 = vpack.c.bf16 %v1283, %v1282
      %v1341 = vpack.c.bf16 %v1285, %v1284
      %v1342 = vpack.c.bf16 %v1287, %v1286
      %v1343 = vpack.c.bf16 %v1289, %v1288
      %v1344 = vpack.c.bf16 %v1291, %v1290
      %v1345 = vpack.c.bf16 %v1293, %v1292
      %v1346 = vpack.c.bf16 %v1295, %v1294
      %v1347 = vpack.c.bf16 %v1297, %v1296
      %v1348 = vpack.c.bf16 %v1299, %v1298
      %v1349 = vpack.c.bf16 %v1301, %v1300
      %v1350 = vpack.c.bf16 %v1303, %v1302
      %v1351 = vpack.c.bf16 %v1305, %v1304
      %v1352 = vpack.c.bf16 %v1307, %v1306
      %v1353 = vpack.c.bf16 %v1309, %v1308
      %v1354 = vpack.c.bf16 %v1311, %v1310
      %v1355 = vpack.c.bf16 %v1313, %v1312
      %v1356 = vpack.c.bf16 %v1315, %v1314
      %v1357 = vpack.c.bf16 %v1317, %v1316
      %v1358 = vpack.c.bf16 %v1319, %v1318
      %v1359 = vpack.c.bf16 %v1321, %v1320
      %v1360 = vpack.c.bf16 %v1323, %v1322
      %v1361 = vpack.c.bf16 %v1325, %v1324
      %v1362 = vpack.c.bf16 %v1327, %v1326
      %v1363 = vpack.c.bf16 %v1329, %v1328
      %v1364 = vpack.c.bf16 %v1331, %v1330
      %v1365 = vpack.c.bf16 %v1333, %v1332
      %v1366 = vld [vmem:[%s5] sm:$0xff]
      %v1367 = vld [vmem:[%s5 + $0x8] sm:$0xff]
      %v1368 = vld [vmem:[%s5 + $0x10] sm:$0xff]
      %v1369 = vld [vmem:[%s5 + $0x18] sm:$0xff]
      %v1370 = vpack.c.bf16 %v1367, %v1366
      %v1371 = vpack.c.bf16 %v1369, %v1368
      %v1372 = vld [vmem:[%s6] sm:$0x1]
      %v1374 = vlaneseq
      %v1375 = vshrl.u32 %v1374, 7
      %v1376 = vsub.s32 0, %v1375
      %v1377 = vrot.slane %v1372, %v1376
      %vm1379 = vcmask 261120
      %v1381 = vsel %vm1379, %v1334, 0
      %v1384 = vsel %vm1379, %v1335, 0
      %v1387 = vsel %vm1379, %v1336, 0
      %v1390 = vsel %vm1379, %v1337, 0
      %v1393 = vsel %vm1379, %v1338, 0
      %v1396 = vsel %vm1379, %v1339, 0
      %v1399 = vsel %vm1379, %v1340, 0
      %v1402 = vsel %vm1379, %v1341, 0
      %v1405 = vsel %vm1379, %v1342, 0
      %v1408 = vsel %vm1379, %v1343, 0
      %v1411 = vsel %vm1379, %v1344, 0
      %v1414 = vsel %vm1379, %v1345, 0
      %v1417 = vsel %vm1379, %v1346, 0
      %v1420 = vsel %vm1379, %v1347, 0
      %v1423 = vsel %vm1379, %v1348, 0
      %v1426 = vsel %vm1379, %v1349, 0
      %v1429 = vsel %vm1379, %v1350, 0
      %v1432 = vsel %vm1379, %v1351, 0
      %v1435 = vsel %vm1379, %v1352, 0
      %v1438 = vsel %vm1379, %v1353, 0
      %v1441 = vsel %vm1379, %v1354, 0
      %v1444 = vsel %vm1379, %v1355, 0
      %v1447 = vsel %vm1379, %v1356, 0
      %v1450 = vsel %vm1379, %v1357, 0
      %v1453 = vsel %vm1379, %v1358, 0
      %v1456 = vsel %vm1379, %v1359, 0
      %v1459 = vsel %vm1379, %v1360, 0
      %v1462 = vsel %vm1379, %v1361, 0
      %v1465 = vsel %vm1379, %v1362, 0
      %v1468 = vsel %vm1379, %v1363, 0
      %v1471 = vsel %vm1379, %v1364, 0
      %v1474 = vsel %vm1379, %v1365, 0
      %1476 = vmatprep.subr.bf16.mxu0 0
      %1477 = vmatpush1.bf16.msra.mxu0 %v1370
      %1478 = vmatprep.subr.bf16.mxu0 0
      %1479 = vmatpush1.bf16.msra.mxu0 %v1371
      %1480 = vmatprep.subr.bf16.mxu0 0
      %1481 = vmatpush1.bf16.msra.mxu0 0
      %1482 = vmatprep.subr.bf16.mxu0 0
      %1483 = vmatpush1.bf16.msra.mxu0 0
      %1484 = vmatprep.subr.bf16.mxu0 0
      %1485 = vmatpush1.bf16.msra.mxu0 0
      %1486 = vmatprep.subr.bf16.mxu0 0
      %1487 = vmatpush1.bf16.msra.mxu0 0
      %1488 = vmatprep.subr.bf16.mxu0 0
      %1489 = vmatpush1.bf16.msra.mxu0 0
      %1490 = vmatprep.subr.bf16.mxu0 0
      %1491 = vmatpush1.bf16.msra.mxu0 0
      %1492 = vmatprep.subr.bf16.mxu0 0
      %1493 = vmatpush1.bf16.msra.mxu0 0
      %1494 = vmatprep.subr.bf16.mxu0 0
      %1495 = vmatpush1.bf16.msra.mxu0 0
      %1496 = vmatprep.subr.bf16.mxu0 0
      %1497 = vmatpush1.bf16.msra.mxu0 0
      %1498 = vmatprep.subr.bf16.mxu0 0
      %1499 = vmatpush1.bf16.msra.mxu0 0
      %1500 = vmatprep.subr.bf16.mxu0 0
      %1501 = vmatpush1.bf16.msra.mxu0 0
      %1502 = vmatprep.subr.bf16.mxu0 0
      %1503 = vmatpush1.bf16.msra.mxu0 0
      %1504 = vmatprep.subr.bf16.mxu0 0
      %1505 = vmatpush1.bf16.msra.mxu0 0
      %1506 = vmatprep.subr.bf16.mxu0 0
      %1507 = vmatpush1.bf16.msra.mxu0 0
      %1508 = vmatprep.mubr.bf16.mxu0 0
      %1509 = vmatmul.mubr.bf16.gmra.mrb[0].mxu0 %v1381
      %v1510 = vpop.f32.mrb[0].mxu0
      %v1511 = vadd.f32 %v1377, %v1510
      %v1512 = vpop.f32.mrb[0].mxu0
      %v1513 = vpop.f32.mrb[0].mxu0
      %v1514 = vadd.f32 %v1377, %v1513
      %v1515 = vpop.f32.mrb[0].mxu0
      %1516 = vmatprep.mubr.bf16.mxu0 0
      %1517 = vmatmul.mubr.bf16.gmra.mrb[0].mxu0 %v1384
      %v1518 = vpop.f32.mrb[0].mxu0
      %v1519 = vadd.f32 %v1377, %v1518
      %v1520 = vpop.f32.mrb[0].mxu0
      %v1521 = vpop.f32.mrb[0].mxu0
      %v1522 = vadd.f32 %v1377, %v1521
      %v1523 = vpop.f32.mrb[0].mxu0
      %1524 = vmatprep.mubr.bf16.mxu0 0
      %1525 = vmatmul.mubr.bf16.gmra.mrb[0].mxu0 %v1387
      %v1526 = vpop.f32.mrb[0].mxu0
      %v1527 = vadd.f32 %v1377, %v1526
      %v1528 = vpop.f32.mrb[0].mxu0
      %v1529 = vpop.f32.mrb[0].mxu0
      %v1530 = vadd.f32 %v1377, %v1529
      %v1531 = vpop.f32.mrb[0].mxu0
      %1532 = vmatprep.mubr.bf16.mxu0 0
      %1533 = vmatmul.mubr.bf16.gmra.mrb[0].mxu0 %v1390
      %v1534 = vpop.f32.mrb[0].mxu0
      %v1535 = vadd.f32 %v1377, %v1534
      %v1536 = vpop.f32.mrb[0].mxu0
      %v1537 = vpop.f32.mrb[0].mxu0
      %v1538 = vadd.f32 %v1377, %v1537
      %v1539 = vpop.f32.mrb[0].mxu0
      %1540 = vmatprep.mubr.bf16.mxu0 0
      %1541 = vmatmul.mubr.bf16.gmra.mrb[0].mxu0 %v1393
      %v1542 = vpop.f32.mrb[0].mxu0
      %v1543 = vadd.f32 %v1377, %v1542
      %v1544 = vpop.f32.mrb[0].mxu0
      %v1545 = vpop.f32.mrb[0].mxu0
      %v1546 = vadd.f32 %v1377, %v1545
      %v1547 = vpop.f32.mrb[0].mxu0
      %1548 = vmatprep.mubr.bf16.mxu0 0
      %1549 = vmatmul.mubr.bf16.gmra.mrb[0].mxu0 %v1396
      %v1550 = vpop.f32.mrb[0].mxu0
      %v1551 = vadd.f32 %v1377, %v1550
      %v1552 = vpop.f32.mrb[0].mxu0
      %v1553 = vpop.f32.mrb[0].mxu0
      %v1554 = vadd.f32 %v1377, %v1553
      %v1555 = vpop.f32.mrb[0].mxu0
      %1556 = vmatprep.mubr.bf16.mxu0 0
      %1557 = vmatmul.mubr.bf16.gmra.mrb[0].mxu0 %v1399
      %v1558 = vpop.f32.mrb[0].mxu0
      %v1559 = vadd.f32 %v1377, %v1558
      %v1560 = vpop.f32.mrb[0].mxu0
      %v1561 = vpop.f32.mrb[0].mxu0
      %v1562 = vadd.f32 %v1377, %v1561
      %v1563 = vpop.f32.mrb[0].mxu0
      %1564 = vmatprep.mubr.bf16.mxu0 0
      %1565 = vmatmul.mubr.bf16.gmra.mrb[0].mxu0 %v1402
      %v1566 = vpop.f32.mrb[0].mxu0
      %v1567 = vadd.f32 %v1377, %v1566
      %v1568 = vpop.f32.mrb[0].mxu0
      %v1569 = vpop.f32.mrb[0].mxu0
      %v1570 = vadd.f32 %v1377, %v1569
      %v1571 = vpop.f32.mrb[0].mxu0
      %1572 = vmatprep.mubr.bf16.mxu0 0
      %1573 = vmatmul.mubr.bf16.gmra.mrb[0].mxu0 %v1405
      %v1574 = vpop.f32.mrb[0].mxu0
      %v1575 = vadd.f32 %v1377, %v1574
      %v1576 = vpop.f32.mrb[0].mxu0
      %v1577 = vpop.f32.mrb[0].mxu0
      %v1578 = vadd.f32 %v1377, %v1577
      %v1579 = vpop.f32.mrb[0].mxu0
      %1580 = vmatprep.mubr.bf16.mxu0 0
      %1581 = vmatmul.mubr.bf16.gmra.mrb[0].mxu0 %v1408
      %v1582 = vpop.f32.mrb[0].mxu0
      %v1583 = vadd.f32 %v1377, %v1582
      %v1584 = vpop.f32.mrb[0].mxu0
      %v1585 = vpop.f32.mrb[0].mxu0
      %v1586 = vadd.f32 %v1377, %v1585
      %v1587 = vpop.f32.mrb[0].mxu0
      %1588 = vmatprep.mubr.bf16.mxu0 0
      %1589 = vmatmul.mubr.bf16.gmra.mrb[0].mxu0 %v1411
      %v1590 = vpop.f32.mrb[0].mxu0
      %v1591 = vadd.f32 %v1377, %v1590
      %v1592 = vpop.f32.mrb[0].mxu0
      %v1593 = vpop.f32.mrb[0].mxu0
      %v1594 = vadd.f32 %v1377, %v1593
      %v1595 = vpop.f32.mrb[0].mxu0
      %1596 = vmatprep.mubr.bf16.mxu0 0
      %1597 = vmatmul.mubr.bf16.gmra.mrb[0].mxu0 %v1414
      %v1598 = vpop.f32.mrb[0].mxu0
      %v1599 = vadd.f32 %v1377, %v1598
      %v1600 = vpop.f32.mrb[0].mxu0
      %v1601 = vpop.f32.mrb[0].mxu0
      %v1602 = vadd.f32 %v1377, %v1601
      %v1603 = vpop.f32.mrb[0].mxu0
      %1604 = vmatprep.mubr.bf16.mxu0 0
      %1605 = vmatmul.mubr.bf16.gmra.mrb[0].mxu0 %v1417
      %v1606 = vpop.f32.mrb[0].mxu0
      %v1607 = vadd.f32 %v1377, %v1606
      %v1608 = vpop.f32.mrb[0].mxu0
      %v1609 = vpop.f32.mrb[0].mxu0
      %v1610 = vadd.f32 %v1377, %v1609
      %v1611 = vpop.f32.mrb[0].mxu0
      %1612 = vmatprep.mubr.bf16.mxu0 0
      %1613 = vmatmul.mubr.bf16.gmra.mrb[0].mxu0 %v1420
      %v1614 = vpop.f32.mrb[0].mxu0
      %v1615 = vadd.f32 %v1377, %v1614
      %v1616 = vpop.f32.mrb[0].mxu0
      %v1617 = vpop.f32.mrb[0].mxu0
      %v1618 = vadd.f32 %v1377, %v1617
      %v1619 = vpop.f32.mrb[0].mxu0
      %1620 = vmatprep.mubr.bf16.mxu0 0
      %1621 = vmatmul.mubr.bf16.gmra.mrb[0].mxu0 %v1423
      %v1622 = vpop.f32.mrb[0].mxu0
      %v1623 = vadd.f32 %v1377, %v1622
      %v1624 = vpop.f32.mrb[0].mxu0
      %v1625 = vpop.f32.mrb[0].mxu0
      %v1626 = vadd.f32 %v1377, %v1625
      %v1627 = vpop.f32.mrb[0].mxu0
      %1628 = vmatprep.mubr.bf16.mxu0 0
      %1629 = vmatmul.mubr.bf16.gmra.mrb[0].mxu0 %v1426
      %v1630 = vpop.f32.mrb[0].mxu0
      %v1631 = vadd.f32 %v1377, %v1630
      %v1632 = vpop.f32.mrb[0].mxu0
      %v1633 = vpop.f32.mrb[0].mxu0
      %v1634 = vadd.f32 %v1377, %v1633
      %v1635 = vpop.f32.mrb[0].mxu0
      %1636 = vmatprep.mubr.bf16.mxu0 0
      %1637 = vmatmul.mubr.bf16.gmra.mrb[0].mxu0 %v1429
      %v1638 = vpop.f32.mrb[0].mxu0
      %v1639 = vadd.f32 %v1377, %v1638
      %v1640 = vpop.f32.mrb[0].mxu0
      %v1641 = vpop.f32.mrb[0].mxu0
      %v1642 = vadd.f32 %v1377, %v1641
      %v1643 = vpop.f32.mrb[0].mxu0
      %1644 = vmatprep.mubr.bf16.mxu0 0
      %1645 = vmatmul.mubr.bf16.gmra.mrb[0].mxu0 %v1432
      %v1646 = vpop.f32.mrb[0].mxu0
      %v1647 = vadd.f32 %v1377, %v1646
      %v1648 = vpop.f32.mrb[0].mxu0
      %v1649 = vpop.f32.mrb[0].mxu0
      %v1650 = vadd.f32 %v1377, %v1649
      %v1651 = vpop.f32.mrb[0].mxu0
      %1652 = vmatprep.mubr.bf16.mxu0 0
      %1653 = vmatmul.mubr.bf16.gmra.mrb[0].mxu0 %v1435
      %v1654 = vpop.f32.mrb[0].mxu0
      %v1655 = vadd.f32 %v1377, %v1654
      %v1656 = vpop.f32.mrb[0].mxu0
      %v1657 = vpop.f32.mrb[0].mxu0
      %v1658 = vadd.f32 %v1377, %v1657
      %v1659 = vpop.f32.mrb[0].mxu0
      %1660 = vmatprep.mubr.bf16.mxu0 0
      %1661 = vmatmul.mubr.bf16.gmra.mrb[0].mxu0 %v1438
      %v1662 = vpop.f32.mrb[0].mxu0
      %v1663 = vadd.f32 %v1377, %v1662
      %v1664 = vpop.f32.mrb[0].mxu0
      %v1665 = vpop.f32.mrb[0].mxu0
      %v1666 = vadd.f32 %v1377, %v1665
      %v1667 = vpop.f32.mrb[0].mxu0
      %1668 = vmatprep.mubr.bf16.mxu0 0
      %1669 = vmatmul.mubr.bf16.gmra.mrb[0].mxu0 %v1441
      %v1670 = vpop.f32.mrb[0].mxu0
      %v1671 = vadd.f32 %v1377, %v1670
      %v1672 = vpop.f32.mrb[0].mxu0
      %v1673 = vpop.f32.mrb[0].mxu0
      %v1674 = vadd.f32 %v1377, %v1673
      %v1675 = vpop.f32.mrb[0].mxu0
      %1676 = vmatprep.mubr.bf16.mxu0 0
      %1677 = vmatmul.mubr.bf16.gmra.mrb[0].mxu0 %v1444
      %v1678 = vpop.f32.mrb[0].mxu0
      %v1679 = vadd.f32 %v1377, %v1678
      %v1680 = vpop.f32.mrb[0].mxu0
      %v1681 = vpop.f32.mrb[0].mxu0
      %v1682 = vadd.f32 %v1377, %v1681
      %v1683 = vpop.f32.mrb[0].mxu0
      %1684 = vmatprep.mubr.bf16.mxu0 0
      %1685 = vmatmul.mubr.bf16.gmra.mrb[0].mxu0 %v1447
      %v1686 = vpop.f32.mrb[0].mxu0
      %v1687 = vadd.f32 %v1377, %v1686
      %v1688 = vpop.f32.mrb[0].mxu0
      %v1689 = vpop.f32.mrb[0].mxu0
      %v1690 = vadd.f32 %v1377, %v1689
      %v1691 = vpop.f32.mrb[0].mxu0
      %1692 = vmatprep.mubr.bf16.mxu0 0
      %1693 = vmatmul.mubr.bf16.gmra.mrb[0].mxu0 %v1450
      %v1694 = vpop.f32.mrb[0].mxu0
      %v1695 = vadd.f32 %v1377, %v1694
      %v1696 = vpop.f32.mrb[0].mxu0
      %v1697 = vpop.f32.mrb[0].mxu0
      %v1698 = vadd.f32 %v1377, %v1697
      %v1699 = vpop.f32.mrb[0].mxu0
      %1700 = vmatprep.mubr.bf16.mxu0 0
      %1701 = vmatmul.mubr.bf16.gmra.mrb[0].mxu0 %v1453
      %v1702 = vpop.f32.mrb[0].mxu0
      %v1703 = vadd.f32 %v1377, %v1702
      %v1704 = vpop.f32.mrb[0].mxu0
      %v1705 = vpop.f32.mrb[0].mxu0
      %v1706 = vadd.f32 %v1377, %v1705
      %v1707 = vpop.f32.mrb[0].mxu0
      %1708 = vmatprep.mubr.bf16.mxu0 0
      %1709 = vmatmul.mubr.bf16.gmra.mrb[0].mxu0 %v1456
      %v1710 = vpop.f32.mrb[0].mxu0
      %v1711 = vadd.f32 %v1377, %v1710
      %v1712 = vpop.f32.mrb[0].mxu0
      %v1713 = vpop.f32.mrb[0].mxu0
      %v1714 = vadd.f32 %v1377, %v1713
      %v1715 = vpop.f32.mrb[0].mxu0
      %1716 = vmatprep.mubr.bf16.mxu0 0
      %1717 = vmatmul.mubr.bf16.gmra.mrb[0].mxu0 %v1459
      %v1718 = vpop.f32.mrb[0].mxu0
      %v1719 = vadd.f32 %v1377, %v1718
      %v1720 = vpop.f32.mrb[0].mxu0
      %v1721 = vpop.f32.mrb[0].mxu0
      %v1722 = vadd.f32 %v1377, %v1721
      %v1723 = vpop.f32.mrb[0].mxu0
      %1724 = vmatprep.mubr.bf16.mxu0 0
      %1725 = vmatmul.mubr.bf16.gmra.mrb[0].mxu0 %v1462
      %v1726 = vpop.f32.mrb[0].mxu0
      %v1727 = vadd.f32 %v1377, %v1726
      %v1728 = vpop.f32.mrb[0].mxu0
      %v1729 = vpop.f32.mrb[0].mxu0
      %v1730 = vadd.f32 %v1377, %v1729
      %v1731 = vpop.f32.mrb[0].mxu0
      %1732 = vmatprep.mubr.bf16.mxu0 0
      %1733 = vmatmul.mubr.bf16.gmra.mrb[0].mxu0 %v1465
      %v1734 = vpop.f32.mrb[0].mxu0
      %v1735 = vadd.f32 %v1377, %v1734
      %v1736 = vpop.f32.mrb[0].mxu0
      %v1737 = vpop.f32.mrb[0].mxu0
      %v1738 = vadd.f32 %v1377, %v1737
      %v1739 = vpop.f32.mrb[0].mxu0
      %1740 = vmatprep.mubr.bf16.mxu0 0
      %1741 = vmatmul.mubr.bf16.gmra.mrb[0].mxu0 %v1468
      %v1742 = vpop.f32.mrb[0].mxu0
      %v1743 = vadd.f32 %v1377, %v1742
      %v1744 = vpop.f32.mrb[0].mxu0
      %v1745 = vpop.f32.mrb[0].mxu0
      %v1746 = vadd.f32 %v1377, %v1745
      %v1747 = vpop.f32.mrb[0].mxu0
      %1748 = vmatprep.mubr.bf16.mxu0 0
      %1749 = vmatmul.mubr.bf16.gmra.mrb[0].mxu0 %v1471
      %v1750 = vpop.f32.mrb[0].mxu0
      %v1751 = vadd.f32 %v1377, %v1750
      %v1752 = vpop.f32.mrb[0].mxu0
      %v1753 = vpop.f32.mrb[0].mxu0
      %v1754 = vadd.f32 %v1377, %v1753
      %v1755 = vpop.f32.mrb[0].mxu0
      %1756 = vmatprep.mubr.bf16.mxu0 0
      %1757 = vmatmul.mubr.bf16.gmra.mrb[0].mxu0 %v1474
      %v1758 = vpop.f32.mrb[0].mxu0
      %v1759 = vadd.f32 %v1377, %v1758
      %v1760 = vpop.f32.mrb[0].mxu0
      %v1761 = vpop.f32.mrb[0].mxu0
      %v1762 = vadd.f32 %v1377, %v1761
      %v1763 = vpop.f32.mrb[0].mxu0
      %1764 = vdwg.mxu0
      %vm1765 = vcmask 31744
      %1766 = vst.msk [vmem:[%s280] sm:$0xff] %vm1765, %v1511
      %1767 = vst.msk [vmem:[%s280 + $0x8] sm:$0xff] %vm1765, %v1514
      %1768 = vst.msk [vmem:[%s280 + $0x10] sm:$0xff] %vm1765, %v1519
      %1769 = vst.msk [vmem:[%s280 + $0x18] sm:$0xff] %vm1765, %v1522
      %1770 = vst.msk [vmem:[%s280 + $0x20] sm:$0xff] %vm1765, %v1527
      %1771 = vst.msk [vmem:[%s280 + $0x28] sm:$0xff] %vm1765, %v1530
      %1772 = vst.msk [vmem:[%s280 + $0x30] sm:$0xff] %vm1765, %v1535
      %1773 = vst.msk [vmem:[%s280 + $0x38] sm:$0xff] %vm1765, %v1538
      %1774 = vst.msk [vmem:[%s280 + $0x40] sm:$0xff] %vm1765, %v1543
      %1775 = vst.msk [vmem:[%s280 + $0x48] sm:$0xff] %vm1765, %v1546
      %1776 = vst.msk [vmem:[%s280 + $0x50] sm:$0xff] %vm1765, %v1551
      %1777 = vst.msk [vmem:[%s280 + $0x58] sm:$0xff] %vm1765, %v1554
      %1778 = vst.msk [vmem:[%s280 + $0x60] sm:$0xff] %vm1765, %v1559
      %1779 = vst.msk [vmem:[%s280 + $0x68] sm:$0xff] %vm1765, %v1562
      %1780 = vst.msk [vmem:[%s280 + $0x70] sm:$0xff] %vm1765, %v1567
      %1781 = vst.msk [vmem:[%s280 + $0x78] sm:$0xff] %vm1765, %v1570
      %1782 = vst.msk [vmem:[%s280 + $0x80] sm:$0xff] %vm1765, %v1575
      %1783 = vst.msk [vmem:[%s280 + $0x88] sm:$0xff] %vm1765, %v1578
      %1784 = vst.msk [vmem:[%s280 + $0x90] sm:$0xff] %vm1765, %v1583
      %1785 = vst.msk [vmem:[%s280 + $0x98] sm:$0xff] %vm1765, %v1586
      %1786 = vst.msk [vmem:[%s280 + $0xa0] sm:$0xff] %vm1765, %v1591
      %1787 = vst.msk [vmem:[%s280 + $0xa8] sm:$0xff] %vm1765, %v1594
      %1788 = vst.msk [vmem:[%s280 + $0xb0] sm:$0xff] %vm1765, %v1599
      %1789 = vst.msk [vmem:[%s280 + $0xb8] sm:$0xff] %vm1765, %v1602
      %1790 = vst.msk [vmem:[%s280 + $0xc0] sm:$0xff] %vm1765, %v1607
      %1791 = vst.msk [vmem:[%s280 + $0xc8] sm:$0xff] %vm1765, %v1610
      %1792 = vst.msk [vmem:[%s280 + $0xd0] sm:$0xff] %vm1765, %v1615
      %1793 = vst.msk [vmem:[%s280 + $0xd8] sm:$0xff] %vm1765, %v1618
      %1794 = vst.msk [vmem:[%s280 + $0xe0] sm:$0xff] %vm1765, %v1623
      %1795 = vst.msk [vmem:[%s280 + $0xe8] sm:$0xff] %vm1765, %v1626
      %1796 = vst.msk [vmem:[%s280 + $0xf0] sm:$0xff] %vm1765, %v1631
      %1797 = vst.msk [vmem:[%s280 + $0xf8] sm:$0xff] %vm1765, %v1634
      %1798 = vst.msk [vmem:[%s280 + $0x100] sm:$0xff] %vm1765, %v1639
      %1799 = vst.msk [vmem:[%s280 + $0x108] sm:$0xff] %vm1765, %v1642
      %1800 = vst.msk [vmem:[%s280 + $0x110] sm:$0xff] %vm1765, %v1647
      %1801 = vst.msk [vmem:[%s280 + $0x118] sm:$0xff] %vm1765, %v1650
      %1802 = vst.msk [vmem:[%s280 + $0x120] sm:$0xff] %vm1765, %v1655
      %1803 = vst.msk [vmem:[%s280 + $0x128] sm:$0xff] %vm1765, %v1658
      %1804 = vst.msk [vmem:[%s280 + $0x130] sm:$0xff] %vm1765, %v1663
      %1805 = vst.msk [vmem:[%s280 + $0x138] sm:$0xff] %vm1765, %v1666
      %1806 = vst.msk [vmem:[%s280 + $0x140] sm:$0xff] %vm1765, %v1671
      %1807 = vst.msk [vmem:[%s280 + $0x148] sm:$0xff] %vm1765, %v1674
      %1808 = vst.msk [vmem:[%s280 + $0x150] sm:$0xff] %vm1765, %v1679
      %1809 = vst.msk [vmem:[%s280 + $0x158] sm:$0xff] %vm1765, %v1682
      %1810 = vst.msk [vmem:[%s280 + $0x160] sm:$0xff] %vm1765, %v1687
      %1811 = vst.msk [vmem:[%s280 + $0x168] sm:$0xff] %vm1765, %v1690
      %1812 = vst.msk [vmem:[%s280 + $0x170] sm:$0xff] %vm1765, %v1695
      %1813 = vst.msk [vmem:[%s280 + $0x178] sm:$0xff] %vm1765, %v1698
      %1814 = vst.msk [vmem:[%s280 + $0x180] sm:$0xff] %vm1765, %v1703
      %1815 = vst.msk [vmem:[%s280 + $0x188] sm:$0xff] %vm1765, %v1706
      %1816 = vst.msk [vmem:[%s280 + $0x190] sm:$0xff] %vm1765, %v1711
      %1817 = vst.msk [vmem:[%s280 + $0x198] sm:$0xff] %vm1765, %v1714
      %1818 = vst.msk [vmem:[%s280 + $0x1a0] sm:$0xff] %vm1765, %v1719
      %1819 = vst.msk [vmem:[%s280 + $0x1a8] sm:$0xff] %vm1765, %v1722
      %1820 = vst.msk [vmem:[%s280 + $0x1b0] sm:$0xff] %vm1765, %v1727
      %1821 = vst.msk [vmem:[%s280 + $0x1b8] sm:$0xff] %vm1765, %v1730
      %1822 = vst.msk [vmem:[%s280 + $0x1c0] sm:$0xff] %vm1765, %v1735
      %1823 = vst.msk [vmem:[%s280 + $0x1c8] sm:$0xff] %vm1765, %v1738
      %1824 = vst.msk [vmem:[%s280 + $0x1d0] sm:$0xff] %vm1765, %v1743
      %1825 = vst.msk [vmem:[%s280 + $0x1d8] sm:$0xff] %vm1765, %v1746
      %1826 = vst.msk [vmem:[%s280 + $0x1e0] sm:$0xff] %vm1765, %v1751
      %1827 = vst.msk [vmem:[%s280 + $0x1e8] sm:$0xff] %vm1765, %v1754
      %1828 = vst.msk [vmem:[%s280 + $0x1f0] sm:$0xff] %vm1765, %v1759
      %1829 = vst.msk [vmem:[%s280 + $0x1f8] sm:$0xff] %vm1765, %v1762
      %s1830 = smul.u32 64, %s18
      %p1831 = scmp.lt.s32.totalorder %s1830, 127
      %s1832 = scalar_select %p1831, %s1830, 127
      %s1833 = smul.addr %s1832, 8
      %s1834 = scalar_lea.vmem %s7, %s1833
      // Predicated region
      $region49: #{tpu_custom_call.1} parent=47 // pred_check
        %p1835 = pneg %p188
      $region50: #{tpu_custom_call.1} parent=47 // pred_check_branch
        %1837 = sbr.rel (%p1835) target = $region52
      $region51: #{tpu_custom_call.1} parent=47 // pred_region
        %s1838 = smul.u32 64, %s18
      $region52: #{tpu_custom_call.1} parent=47 // pred_fallthru
        _
    $region48: #{tpu_custom_call.1} parent=5 // pred_fallthru
      _
    %p1839 = scmp.le.s32.totalorder 2, %s13
    // Predicated region
    $region53: #{tpu_custom_call.1} parent=5 // pred_check
      %p1840 = pneg %p1839
    $region54: #{tpu_custom_call.1} parent=5 // pred_check_branch
      %1842 = sbr.rel (%p1840) target = $region56
    $region55: #{tpu_custom_call.1} parent=5 // pred_region
      %s1843 = ssub.s32 %s13, 2
      // Predicated region
      $region57: #{tpu_custom_call.1} parent=55 // pred_check
        %p1844 = pneg %p194
      $region58: #{tpu_custom_call.1} parent=55 // pred_check_branch
        %1846 = sbr.rel (%p1844) target = $region60
      $region59: #{tpu_custom_call.1} parent=55 // pred_region
        %s1847 = smul.u32 64, %s19
        %p1848 = scmp.lt.s32.totalorder %s1847, 127
        %s1849 = scalar_select %p1848, %s1847, 127
        %s1850 = smul.addr %s1849, 8
        %s1851 = scalar_lea.vmem %s7, %s1850
      $region60: #{tpu_custom_call.1} parent=55 // pred_fallthru
        _
    $region56: #{tpu_custom_call.1} parent=5 // pred_fallthru
      _
  $region6: #{tpu_custom_call.1} parent=0 // loop_footer
    %s17 = sadd.s32 1, %s13
  $region7: #{tpu_custom_call.1} parent=0 // loop_footer_branch
    %12 = sbr.rel target = $region3
  $region8: #{tpu_custom_call.1} parent=0 // loop_exit
    _

</llo_original>
